<compile_context>
chip_gen: v7x
topology: tpu7x:2x2x1
jax: 0.10.0
libtpu: 0.0.40
codegen_flags: <defaults>
</compile_context>

<pallas_src>
import functools

import jax
import jax.numpy as jnp
from jax import lax
from jax.experimental import pallas as pl
from jax.experimental.pallas import tpu as pltpu


# ----------------------------- Pallas kernels ------------------------------ #

def _conv3x3_kernel(*refs, H, W, cin, cout, apply_prologue):
    """Channel-major fused 3x3 conv (+ optional BN+ReLU prologue) + BN stats.

    inputs  (with prologue): scale (cin,1), shift (cin,1), x (1,cin,HW),
                             w (cout,9cin), b (cout,1)
    inputs  (no prologue)  : x, w, b
    outputs                : y (1,cout,HW), psum (1,cout,1), psq (1,cout,1)
    """
    if apply_prologue:
        scale_ref, shift_ref, x_ref, w_ref, b_ref, y_ref, sum_ref, sq_ref = refs
    else:
        x_ref, w_ref, b_ref, y_ref, sum_ref, sq_ref = refs

    HW = H * W
    x = x_ref[0]                                            # (cin, HW)

    if apply_prologue:
        # Previous layer's BatchNorm + ReLU (scale/shift precomputed on the host
        # from the fused statistics) folded into this conv's input read, in f32.
        x = jnp.maximum(x * scale_ref[...] + shift_ref[...], 0.0)

    x = x.astype(jnp.bfloat16)                              # single bf16 cast

    # Zero-extend the flat activation by one image row (+1) on each side so the
    # "SAME" padding rows come for free; column wrap is handled by two masks.
    pad = jnp.zeros((cin, W + 1), jnp.bfloat16)
    xe = jnp.concatenate([pad, x, pad], axis=1)             # (cin, HW + 2W + 2)

    pos = lax.broadcasted_iota(jnp.int32, (1, HW), 1)
    px = pos % W
    valid_left = px >= 1                                    # for dx = -1
    valid_right = px < (W - 1)                              # for dx = +1

    # TODO(synk): at larger HW, realize these lane shifts with pltpu.roll (XLU
    # slot, overlaps MXU/VPU) instead of static lane-offset slices.
    taps = []
    for dy in (-1, 0, 1):
        for dx in (-1, 0, 1):
            d = dy * W + dx
            if d == 0:
                t = x
            else:
                start = (W + 1) + d
                t = xe[:, start:start + HW]                 # (cin, HW)
            if dx == -1:
                t = jnp.where(valid_left, t, jnp.zeros_like(t))
            elif dx == 1:
                t = jnp.where(valid_right, t, jnp.zeros_like(t))
            taps.append(t)
    r = jnp.concatenate(taps, axis=0)                       # (9*cin, HW) bf16

    # One K = 9*cin MXU matmul, f32 accumulation, lane-dense (cout, HW) result.
    acc = jnp.dot(w_ref[...], r, preferred_element_type=jnp.float32)
    acc = acc + b_ref[...]                                  # (cout, 1) f32 bias

    y_ref[0] = acc                                          # lane-dense store
    # Per-sample BN partial statistics, fused into the same pass.
    sum_ref[0] = jnp.sum(acc, axis=1, keepdims=True)        # (cout, 1)
    sq_ref[0] = jnp.sum(acc * acc, axis=1, keepdims=True)   # (cout, 1)


def _bn_relu_kernel(scale_ref, shift_ref, y_ref, o_ref):
    """Final BN + ReLU epilogue with precomputed per-channel scale/shift."""
    o_ref[0] = jnp.maximum(y_ref[0] * scale_ref[...] + shift_ref[...], 0.0)


# ------------------------------- wrappers ---------------------------------- #

def _vmem_budget(*nbytes):
    """Scoped-VMEM request from actual tile bytes (2x for double buffering),
    capped well under v7x's 64 MiB per-TensorCore physical VMEM."""
    need = 2 * int(sum(nbytes)) + (4 << 20)
    return int(min(max(need, 8 << 20), 48 << 20))


def conv3x3_bn_stats(x, w_mat, b, *, H, W, scale_shift=None):
    """Fused conv3x3 (+ optional BN+ReLU prologue) + per-sample BN statistics.

    x          : (N, Cin, H*W) channel-major activation (bf16 or f32).
    w_mat      : (Cout, 9*Cin) bf16 weights (host-reshaped, (ky,kx,ci) order).
    b          : (Cout, 1) f32 bias.
    scale_shift: None, or (scale, shift) each (Cin, 1) f32 — the previous
                 layer's BN+ReLU folded into this conv's input read.
    returns    : y (N, Cout, HW) f32, psum (N, Cout, 1), psq (N, Cout, 1)
    """
    N, cin, HW = x.shape
    cout = w_mat.shape[0]
    assert HW == H * W

    kernel = functools.partial(_conv3x3_kernel, H=H, W=W, cin=cin, cout=cout,
                               apply_prologue=scale_shift is not None)

    in_specs = []
    args = []
    if scale_shift is not None:
        scale, shift = scale_shift
        in_specs += [pl.BlockSpec((cin, 1), lambda n: (0, 0)),
                     pl.BlockSpec((cin, 1), lambda n: (0, 0))]
        args += [scale, shift]
    in_specs += [
        pl.BlockSpec((1, cin, HW), lambda n: (n, 0, 0)),      # activation tile
        pl.BlockSpec((cout, 9 * cin), lambda n: (0, 0)),      # weights (resident)
        pl.BlockSpec((cout, 1), lambda n: (0, 0)),            # bias
    ]
    args += [x, w_mat, b]

    vmem = _vmem_budget(cin * HW * x.dtype.itemsize,          # input tile
                        9 * cin * HW * 2,                     # im2col operand
                        cout * 9 * cin * 2,                   # weights
                        cout * (HW + 2) * 4)                  # output + stats

    # TODO(synk): at realistic shapes add a spatial row-tile grid axis (halo'd
    # row loads via manual DMA, per-tile psum/psq accumulation) so each
    # TensorCore gets >2 pipeline steps and per-step VMEM stays bounded.
    return pl.pallas_call(
        kernel,
        out_shape=(jax.ShapeDtypeStruct((N, cout, HW), jnp.float32),
                   jax.ShapeDtypeStruct((N, cout, 1), jnp.float32),
                   jax.ShapeDtypeStruct((N, cout, 1), jnp.float32)),
        grid=(N,),
        in_specs=in_specs,
        out_specs=(pl.BlockSpec((1, cout, HW), lambda n: (n, 0, 0)),
                   pl.BlockSpec((1, cout, 1), lambda n: (n, 0, 0)),
                   pl.BlockSpec((1, cout, 1), lambda n: (n, 0, 0))),
        compiler_params=pltpu.CompilerParams(
            dimension_semantics=("parallel",),
            vmem_limit_bytes=vmem),
    )(*args)


def bn_relu_out(y, scale, shift):
    """Final BatchNorm + ReLU (channel-major), HW tiled for pipeline depth."""
    N, C, HW = y.shape
    tile = 128 if HW % 128 == 0 else HW
    return pl.pallas_call(
        _bn_relu_kernel,
        out_shape=jax.ShapeDtypeStruct((N, C, HW), jnp.float32),
        grid=(N, HW // tile),
        in_specs=[pl.BlockSpec((C, 1), lambda n, j: (0, 0)),
                  pl.BlockSpec((C, 1), lambda n, j: (0, 0)),
                  pl.BlockSpec((1, C, tile), lambda n, j: (n, 0, j))],
        out_specs=pl.BlockSpec((1, C, tile), lambda n, j: (n, 0, j)),
        compiler_params=pltpu.CompilerParams(
            dimension_semantics=("parallel", "parallel"),
            vmem_limit_bytes=_vmem_budget(2 * C * tile * 4)),
    )(scale, shift, y)


def _bn_scale_shift(psum, psq, gamma, beta, count, eps):
    """Per-layer BN scale/shift from fused statistics (tiny O(C) XLA op)."""
    s = jnp.sum(psum, axis=0)[:, 0]                          # (C,)
    q = jnp.sum(psq, axis=0)[:, 0]
    mean = s / count
    # TODO(synk): E[x^2]-E[x]^2 (clamped) can cancel catastrophically at large
    # N*H*W; switch to a two-pass / Welford-style accumulation at scale.
    var = jnp.maximum(q / count - mean * mean, 0.0)          # biased variance
    scale = gamma * lax.rsqrt(var + eps)
    shift = beta - mean * scale
    return scale[:, None].astype(jnp.float32), shift[:, None].astype(jnp.float32)


# ----------------------------- ConvBlock model ----------------------------- #

def init_params(key, cin, cmid, cout):
    k1, k2, k3, k4 = jax.random.split(key, 4)
    return {
        "w1": jax.random.normal(k1, (cmid, cin, 3, 3), jnp.float32) * 0.1,  # OIHW
        "b1": jax.random.normal(k2, (cmid,), jnp.float32) * 0.1,
        "gamma1": jnp.ones((cmid,), jnp.float32),   # nn.BatchNorm2d default init
        "beta1": jnp.zeros((cmid,), jnp.float32),
        "w2": jax.random.normal(k3, (cout, cmid, 3, 3), jnp.float32) * 0.1,
        "b2": jax.random.normal(k4, (cout,), jnp.float32) * 0.1,
        "gamma2": jnp.ones((cout,), jnp.float32),
        "beta2": jnp.zeros((cout,), jnp.float32),
    }


def conv_block_forward(x_nchw, p, eps=1e-5):
    N, Cin, H, W = x_nchw.shape
    Cmid = p["w1"].shape[0]
    Cout = p["w2"].shape[0]
    HW = H * W
    count = float(N * HW)

    # NCHW is already channel-major (C on sublanes, HW on lanes): no transpose,
    # no zero-pad glue passes — just a free reshape + one bf16 cast.
    xf = x_nchw.reshape(N, Cin, HW).astype(jnp.bfloat16)

    # Weights pre-reshaped on the host to lane-dense 2D (Cout, 9*Cin) matrices
    # matching the kernel's (ky, kx, ci) tap order.
    w1m = jnp.transpose(p["w1"], (0, 2, 3, 1)).reshape(Cmid, 9 * Cin).astype(jnp.bfloat16)
    w2m = jnp.transpose(p["w2"], (0, 2, 3, 1)).reshape(Cout, 9 * Cmid).astype(jnp.bfloat16)
    b1 = p["b1"].astype(jnp.float32)[:, None]
    b2 = p["b2"].astype(jnp.float32)[:, None]

    # Layer 1: conv1 + BN1 partial statistics fused in one pass.
    y1, s1, q1 = conv3x3_bn_stats(xf, w1m, b1, H=H, W=W)
    scale1, shift1 = _bn_scale_shift(s1, q1, p["gamma1"], p["beta1"], count, eps)

    # Layer 2: BN1 + ReLU folded into conv2's input read, + BN2 partial stats.
    # TODO(synk): at scale, store y1 in bf16 (halves its HBM traffic) once the
    # tolerance budget allows BN to run on bf16-rounded activations.
    y2, s2, q2 = conv3x3_bn_stats(y1, w2m, b2, H=H, W=W,
                                  scale_shift=(scale1, shift1))
    scale2, shift2 = _bn_scale_shift(s2, q2, p["gamma2"], p["beta2"], count, eps)

    # Final BN2 + ReLU; output is already channel-major -> free NCHW reshape.
    out = bn_relu_out(y2, scale2, shift2)
    return out.reshape(N, Cout, H, W)


def reference_forward(x_nchw, p, eps=1e-5):
    """Pure-JAX reference with the same precision policy (bf16 MXU, f32 BN)."""
    def conv(x, w, b):
        y = lax.conv_general_dilated(
            x.astype(jnp.bfloat16), w.astype(jnp.bfloat16),
            window_strides=(1, 1), padding="SAME",
            dimension_numbers=("NCHW", "OIHW", "NCHW"),
            preferred_element_type=jnp.float32)
        return y + b.astype(jnp.float32)[None, :, None, None]

    def bn_relu(y, g, bt):
        m = jnp.mean(y, axis=(0, 2, 3), keepdims=True)
        v = jnp.var(y, axis=(0, 2, 3), keepdims=True)       # biased variance
        return jnp.maximum((y - m) * lax.rsqrt(v + eps) * g[None, :, None, None]
                           + bt[None, :, None, None], 0.0)

    a1 = bn_relu(conv(x_nchw, p["w1"], p["b1"]), p["gamma1"], p["beta1"])
    a2 = bn_relu(conv(a1, p["w2"], p["b2"]), p["gamma2"], p["beta2"])
    return a2


if __name__ == "__main__":
    key = jax.random.PRNGKey(0)
    kx, kp = jax.random.split(key)

    N, Cin, Cmid, Cout, H, W = 2, 4, 8, 4, 16, 16
    x = jax.random.normal(kx, (N, Cin, H, W), jnp.float32)
    params = init_params(kp, Cin, Cmid, Cout)

    out = jax.block_until_ready(jax.jit(conv_block_forward)(x, params))
    assert out.shape == (N, Cout, H, W), out.shape

    ref = jax.block_until_ready(reference_forward(x, params))
    max_err = float(jnp.max(jnp.abs(out - ref)))
    assert jnp.allclose(out, ref, rtol=1e-3, atol=1e-3), max_err

    print("KERNEL_OK")
</pallas_src>

<mosaic_0001>
module attributes {stable_mosaic.version = 11 : i64} {
  func.func @_conv3x3_kernel(%arg0: i32, %arg1: memref<1x4x256xbf16, #tpu.memory_space<vmem>>, %arg2: memref<8x36xbf16, #tpu.memory_space<vmem>>, %arg3: memref<8x1xf32, #tpu.memory_space<vmem>>, %arg4: memref<1x8x256xf32, #tpu.memory_space<vmem>>, %arg5: memref<1x8x1xf32, #tpu.memory_space<vmem>>, %arg6: memref<1x8x1xf32, #tpu.memory_space<vmem>>) attributes {dimension_semantics = [#tpu.dimension_semantics<parallel>], iteration_bounds = array<i64: 2>, scalar_prefetch = 0 : i64, scratch_operands = 0 : i64, tpu.core_type = #tpu.core_type<tc>, window_params = [{transform_indices = @transform_0, window_bounds = array<i64: 1, 4, 256>}, {pipeline_mode = #tpu.pipeline_mode<synchronous>, transform_indices = @transform_1, window_bounds = array<i64: 8, 36>}, {pipeline_mode = #tpu.pipeline_mode<synchronous>, transform_indices = @transform_2, window_bounds = array<i64: 8, 1>}, {transform_indices = @transform_3, window_bounds = array<i64: 1, 8, 256>}, {transform_indices = @transform_4, window_bounds = array<i64: 1, 8, 1>}, {transform_indices = @transform_5, window_bounds = array<i64: 1, 8, 1>}]} {
    %c0 = arith.constant 0 : index
    %c0_0 = arith.constant 0 : index
    %c0_1 = arith.constant 0 : index
    %0 = vector.load %arg1[%c0, %c0_0, %c0_1] : memref<1x4x256xbf16, #tpu.memory_space<vmem>>, vector<1x4x256xbf16>
    %1 = vector.shape_cast %0 : vector<1x4x256xbf16> to vector<4x256xbf16>
    %cst = arith.constant 0.000000e+00 : bf16
    %2 = vector.broadcast %cst : bf16 to vector<4x17xbf16>
    %3 = tpu.concatenate %2, %1, %2 in 1 : vector<4x17xbf16>, vector<4x256xbf16>, vector<4x17xbf16> -> vector<4x290xbf16>
    %4 = tpu.iota {dimensions = array<i32: 1>} : vector<1x256xi32>
    %c16_i32 = arith.constant 16 : i32
    %c0_i32 = arith.constant 0 : i32
    %5 = arith.cmpi eq, %c16_i32, %c0_i32 : i32
    %c1_i32 = arith.constant 1 : i32
    %6 = arith.select %5, %c1_i32, %c16_i32 : i32
    %7 = vector.broadcast %6 : i32 to vector<1x256xi32>
    %8 = arith.remsi %4, %7 : vector<1x256xi32>
    %c0_i32_2 = arith.constant 0 : i32
    %9 = vector.broadcast %c0_i32_2 : i32 to vector<1x256xi32>
    %10 = arith.cmpi ne, %8, %9 : vector<1x256xi32>
    %c0_i32_3 = arith.constant 0 : i32
    %11 = vector.broadcast %c0_i32_3 : i32 to vector<1x256xi32>
    %12 = arith.cmpi slt, %8, %11 : vector<1x256xi32>
    %c0_i32_4 = arith.constant 0 : i32
    %13 = arith.cmpi slt, %6, %c0_i32_4 : i32
    %14 = vector.broadcast %13 : i1 to vector<1x256xi1>
    %15 = vector.broadcast %14 : vector<1x256xi1> to vector<1x256xi1>
    %16 = arith.xori %12, %15 : vector<1x256xi1>
    %17 = arith.andi %16, %10 : vector<1x256xi1>
    %18 = vector.broadcast %6 : i32 to vector<1x256xi32>
    %19 = arith.addi %8, %18 : vector<1x256xi32>
    %20 = arith.select %17, %19, %8 : vector<1x256xi1>, vector<1x256xi32>
    %c1_i32_5 = arith.constant 1 : i32
    %21 = vector.broadcast %c1_i32_5 : i32 to vector<1x256xi32>
    %22 = arith.cmpi sge, %20, %21 : vector<1x256xi32>
    %c15_i32 = arith.constant 15 : i32
    %23 = vector.broadcast %c15_i32 : i32 to vector<1x256xi32>
    %24 = arith.cmpi slt, %20, %23 : vector<1x256xi32>
    %25 = vector.extract_strided_slice %3 {offsets = [0, 0], sizes = [4, 256], strides = [1, 1]} : vector<4x290xbf16> to vector<4x256xbf16>
    %cst_6 = arith.constant 0.000000e+00 : bf16
    %26 = vector.broadcast %cst_6 : bf16 to vector<4x256xbf16>
    %27 = vector.shape_cast %22 : vector<1x256xi1> to vector<1x256xi1>
    %28 = vector.broadcast %27 : vector<1x256xi1> to vector<4x256xi1>
    %29 = arith.select %28, %25, %26 : vector<4x256xi1>, vector<4x256xbf16>
    %30 = vector.extract_strided_slice %3 {offsets = [0, 1], sizes = [4, 256], strides = [1, 1]} : vector<4x290xbf16> to vector<4x256xbf16>
    %31 = vector.extract_strided_slice %3 {offsets = [0, 2], sizes = [4, 256], strides = [1, 1]} : vector<4x290xbf16> to vector<4x256xbf16>
    %cst_7 = arith.constant 0.000000e+00 : bf16
    %32 = vector.broadcast %cst_7 : bf16 to vector<4x256xbf16>
    %33 = vector.shape_cast %24 : vector<1x256xi1> to vector<1x256xi1>
    %34 = vector.broadcast %33 : vector<1x256xi1> to vector<4x256xi1>
    %35 = arith.select %34, %31, %32 : vector<4x256xi1>, vector<4x256xbf16>
    %36 = vector.extract_strided_slice %3 {offsets = [0, 16], sizes = [4, 256], strides = [1, 1]} : vector<4x290xbf16> to vector<4x256xbf16>
    %cst_8 = arith.constant 0.000000e+00 : bf16
    %37 = vector.broadcast %cst_8 : bf16 to vector<4x256xbf16>
    %38 = vector.shape_cast %22 : vector<1x256xi1> to vector<1x256xi1>
    %39 = vector.broadcast %38 : vector<1x256xi1> to vector<4x256xi1>
    %40 = arith.select %39, %36, %37 : vector<4x256xi1>, vector<4x256xbf16>
    %41 = vector.extract_strided_slice %3 {offsets = [0, 18], sizes = [4, 256], strides = [1, 1]} : vector<4x290xbf16> to vector<4x256xbf16>
    %cst_9 = arith.constant 0.000000e+00 : bf16
    %42 = vector.broadcast %cst_9 : bf16 to vector<4x256xbf16>
    %43 = vector.shape_cast %24 : vector<1x256xi1> to vector<1x256xi1>
    %44 = vector.broadcast %43 : vector<1x256xi1> to vector<4x256xi1>
    %45 = arith.select %44, %41, %42 : vector<4x256xi1>, vector<4x256xbf16>
    %46 = vector.extract_strided_slice %3 {offsets = [0, 32], sizes = [4, 256], strides = [1, 1]} : vector<4x290xbf16> to vector<4x256xbf16>
    %cst_10 = arith.constant 0.000000e+00 : bf16
    %47 = vector.broadcast %cst_10 : bf16 to vector<4x256xbf16>
    %48 = vector.shape_cast %22 : vector<1x256xi1> to vector<1x256xi1>
    %49 = vector.broadcast %48 : vector<1x256xi1> to vector<4x256xi1>
    %50 = arith.select %49, %46, %47 : vector<4x256xi1>, vector<4x256xbf16>
    %51 = vector.extract_strided_slice %3 {offsets = [0, 33], sizes = [4, 256], strides = [1, 1]} : vector<4x290xbf16> to vector<4x256xbf16>
    %52 = vector.extract_strided_slice %3 {offsets = [0, 34], sizes = [4, 256], strides = [1, 1]} : vector<4x290xbf16> to vector<4x256xbf16>
    %cst_11 = arith.constant 0.000000e+00 : bf16
    %53 = vector.broadcast %cst_11 : bf16 to vector<4x256xbf16>
    %54 = vector.shape_cast %24 : vector<1x256xi1> to vector<1x256xi1>
    %55 = vector.broadcast %54 : vector<1x256xi1> to vector<4x256xi1>
    %56 = arith.select %55, %52, %53 : vector<4x256xi1>, vector<4x256xbf16>
    %57 = tpu.concatenate %29, %30, %35, %40, %1, %45, %50, %51, %56 in 0 : vector<4x256xbf16>, vector<4x256xbf16>, vector<4x256xbf16>, vector<4x256xbf16>, vector<4x256xbf16>, vector<4x256xbf16>, vector<4x256xbf16>, vector<4x256xbf16>, vector<4x256xbf16> -> vector<36x256xbf16>
    %c0_12 = arith.constant 0 : index
    %c0_13 = arith.constant 0 : index
    %58 = vector.load %arg2[%c0_12, %c0_13] : memref<8x36xbf16, #tpu.memory_space<vmem>>, vector<8x36xbf16>
    %cst_14 = arith.constant dense<0.000000e+00> : vector<8x256xf32>
    %59 = tpu.matmul %58, %57, %cst_14 {dimension_numbers = #tpu.dot_dimension_numbers<[1], [0], [0], [1], [0, 0, 1, 1], [], []>} : vector<8x36xbf16>, vector<36x256xbf16>, vector<8x256xf32> -> vector<8x256xf32>
    %c0_15 = arith.constant 0 : index
    %c0_16 = arith.constant 0 : index
    %60 = vector.load %arg3[%c0_15, %c0_16] : memref<8x1xf32, #tpu.memory_space<vmem>>, vector<8x1xf32>
    %61 = vector.broadcast %60 : vector<8x1xf32> to vector<8x256xf32>
    %62 = arith.addf %59, %61 : vector<8x256xf32>
    %c0_17 = arith.constant 0 : index
    %c0_18 = arith.constant 0 : index
    %c0_19 = arith.constant 0 : index
    %63 = vector.load %arg4[%c0_17, %c0_18, %c0_19] : memref<1x8x256xf32, #tpu.memory_space<vmem>>, vector<1x8x256xf32>
    %64 = vector.shape_cast %63 : vector<1x8x256xf32> to vector<8x256xf32>
    %65 = vector.shape_cast %62 : vector<8x256xf32> to vector<1x8x256xf32>
    tpu.vector_store %arg4[%c0_17, %c0_18, %c0_19], %65 {strides = array<i32>} : memref<1x8x256xf32, #tpu.memory_space<vmem>>, vector<1x8x256xf32>,
    %cst_20 = arith.constant dense<0.000000e+00> : vector<8xf32>
    %66 = vector.multi_reduction <add>, %62, %cst_20 [1] : vector<8x256xf32> to vector<8xf32>
    %67 = vector.shape_cast %66 : vector<8xf32> to vector<8x1xf32>
    %c0_21 = arith.constant 0 : index
    %c0_22 = arith.constant 0 : index
    %c0_23 = arith.constant 0 : index
    %68 = vector.load %arg5[%c0_21, %c0_22, %c0_23] : memref<1x8x1xf32, #tpu.memory_space<vmem>>, vector<1x8x1xf32>
    %69 = vector.shape_cast %68 : vector<1x8x1xf32> to vector<8x1xf32>
    %70 = vector.shape_cast %67 : vector<8x1xf32> to vector<1x8x1xf32>
    tpu.vector_store %arg5[%c0_21, %c0_22, %c0_23], %70 {strides = array<i32>} : memref<1x8x1xf32, #tpu.memory_space<vmem>>, vector<1x8x1xf32>,
    %71 = arith.mulf %62, %62 : vector<8x256xf32>
    %cst_24 = arith.constant dense<0.000000e+00> : vector<8xf32>
    %72 = vector.multi_reduction <add>, %71, %cst_24 [1] : vector<8x256xf32> to vector<8xf32>
    %73 = vector.shape_cast %72 : vector<8xf32> to vector<8x1xf32>
    %c0_25 = arith.constant 0 : index
    %c0_26 = arith.constant 0 : index
    %c0_27 = arith.constant 0 : index
    %74 = vector.load %arg6[%c0_25, %c0_26, %c0_27] : memref<1x8x1xf32, #tpu.memory_space<vmem>>, vector<1x8x1xf32>
    %75 = vector.shape_cast %74 : vector<1x8x1xf32> to vector<8x1xf32>
    %76 = vector.shape_cast %73 : vector<8x1xf32> to vector<1x8x1xf32>
    tpu.vector_store %arg6[%c0_25, %c0_26, %c0_27], %76 {strides = array<i32>} : memref<1x8x1xf32, #tpu.memory_space<vmem>>, vector<1x8x1xf32>,
    return
  }
  func.func @transform_0(%arg0: i32) -> (i32, i32, i32) {
    %c0_i32 = arith.constant 0 : i32
    %c0_i32_0 = arith.constant 0 : i32
    %c0_i32_1 = arith.constant 0 : i32
    return %arg0, %c0_i32, %c0_i32_0 : i32, i32, i32
  }
  func.func @transform_1(%arg0: i32) -> (i32, i32) {
    %c0_i32 = arith.constant 0 : i32
    %c0_i32_0 = arith.constant 0 : i32
    %c0_i32_1 = arith.constant 0 : i32
    return %c0_i32, %c0_i32_0 : i32, i32
  }
  func.func @transform_2(%arg0: i32) -> (i32, i32) {
    %c0_i32 = arith.constant 0 : i32
    %c0_i32_0 = arith.constant 0 : i32
    %c0_i32_1 = arith.constant 0 : i32
    return %c0_i32, %c0_i32_0 : i32, i32
  }
  func.func @transform_3(%arg0: i32) -> (i32, i32, i32) {
    %c0_i32 = arith.constant 0 : i32
    %c0_i32_0 = arith.constant 0 : i32
    %c0_i32_1 = arith.constant 0 : i32
    return %arg0, %c0_i32, %c0_i32_0 : i32, i32, i32
  }
  func.func @transform_4(%arg0: i32) -> (i32, i32, i32) {
    %c0_i32 = arith.constant 0 : i32
    %c0_i32_0 = arith.constant 0 : i32
    %c0_i32_1 = arith.constant 0 : i32
    return %arg0, %c0_i32, %c0_i32_0 : i32, i32, i32
  }
  func.func @transform_5(%arg0: i32) -> (i32, i32, i32) {
    %c0_i32 = arith.constant 0 : i32
    %c0_i32_0 = arith.constant 0 : i32
    %c0_i32_1 = arith.constant 0 : i32
    return %arg0, %c0_i32, %c0_i32_0 : i32, i32, i32
  }
}

module attributes {stable_mosaic.version = 11 : i64} {
  func.func @_conv3x3_kernel(%arg0: i32, %arg1: memref<8x1xf32, #tpu.memory_space<vmem>>, %arg2: memref<8x1xf32, #tpu.memory_space<vmem>>, %arg3: memref<1x8x256xf32, #tpu.memory_space<vmem>>, %arg4: memref<4x72xbf16, #tpu.memory_space<vmem>>, %arg5: memref<4x1xf32, #tpu.memory_space<vmem>>, %arg6: memref<1x4x256xf32, #tpu.memory_space<vmem>>, %arg7: memref<1x4x1xf32, #tpu.memory_space<vmem>>, %arg8: memref<1x4x1xf32, #tpu.memory_space<vmem>>) attributes {dimension_semantics = [#tpu.dimension_semantics<parallel>], iteration_bounds = array<i64: 2>, scalar_prefetch = 0 : i64, scratch_operands = 0 : i64, tpu.core_type = #tpu.core_type<tc>, window_params = [{pipeline_mode = #tpu.pipeline_mode<synchronous>, transform_indices = @transform_0, window_bounds = array<i64: 8, 1>}, {pipeline_mode = #tpu.pipeline_mode<synchronous>, transform_indices = @transform_1, window_bounds = array<i64: 8, 1>}, {transform_indices = @transform_2, window_bounds = array<i64: 1, 8, 256>}, {pipeline_mode = #tpu.pipeline_mode<synchronous>, transform_indices = @transform_3, window_bounds = array<i64: 4, 72>}, {pipeline_mode = #tpu.pipeline_mode<synchronous>, transform_indices = @transform_4, window_bounds = array<i64: 4, 1>}, {transform_indices = @transform_5, window_bounds = array<i64: 1, 4, 256>}, {transform_indices = @transform_6, window_bounds = array<i64: 1, 4, 1>}, {transform_indices = @transform_7, window_bounds = array<i64: 1, 4, 1>}]} {
    %c0 = arith.constant 0 : index
    %c0_0 = arith.constant 0 : index
    %c0_1 = arith.constant 0 : index
    %0 = vector.load %arg3[%c0, %c0_0, %c0_1] : memref<1x8x256xf32, #tpu.memory_space<vmem>>, vector<1x8x256xf32>
    %1 = vector.shape_cast %0 : vector<1x8x256xf32> to vector<8x256xf32>
    %c0_2 = arith.constant 0 : index
    %c0_3 = arith.constant 0 : index
    %2 = vector.load %arg1[%c0_2, %c0_3] : memref<8x1xf32, #tpu.memory_space<vmem>>, vector<8x1xf32>
    %3 = vector.broadcast %2 : vector<8x1xf32> to vector<8x256xf32>
    %4 = arith.mulf %1, %3 : vector<8x256xf32>
    %c0_4 = arith.constant 0 : index
    %c0_5 = arith.constant 0 : index
    %5 = vector.load %arg2[%c0_4, %c0_5] : memref<8x1xf32, #tpu.memory_space<vmem>>, vector<8x1xf32>
    %6 = vector.broadcast %5 : vector<8x1xf32> to vector<8x256xf32>
    %7 = arith.addf %4, %6 : vector<8x256xf32>
    %cst = arith.constant 0.000000e+00 : f32
    %8 = vector.broadcast %cst : f32 to vector<8x256xf32>
    %9 = arith.maximumf %7, %8 : vector<8x256xf32>
    %10 = arith.truncf %9 : vector<8x256xf32> to vector<8x256xbf16>
    %cst_6 = arith.constant 0.000000e+00 : bf16
    %11 = vector.broadcast %cst_6 : bf16 to vector<8x17xbf16>
    %12 = tpu.concatenate %11, %10, %11 in 1 : vector<8x17xbf16>, vector<8x256xbf16>, vector<8x17xbf16> -> vector<8x290xbf16>
    %13 = tpu.iota {dimensions = array<i32: 1>} : vector<1x256xi32>
    %c16_i32 = arith.constant 16 : i32
    %c0_i32 = arith.constant 0 : i32
    %14 = arith.cmpi eq, %c16_i32, %c0_i32 : i32
    %c1_i32 = arith.constant 1 : i32
    %15 = arith.select %14, %c1_i32, %c16_i32 : i32
    %16 = vector.broadcast %15 : i32 to vector<1x256xi32>
    %17 = arith.remsi %13, %16 : vector<1x256xi32>
    %c0_i32_7 = arith.constant 0 : i32
    %18 = vector.broadcast %c0_i32_7 : i32 to vector<1x256xi32>
    %19 = arith.cmpi ne, %17, %18 : vector<1x256xi32>
    %c0_i32_8 = arith.constant 0 : i32
    %20 = vector.broadcast %c0_i32_8 : i32 to vector<1x256xi32>
    %21 = arith.cmpi slt, %17, %20 : vector<1x256xi32>
    %c0_i32_9 = arith.constant 0 : i32
    %22 = arith.cmpi slt, %15, %c0_i32_9 : i32
    %23 = vector.broadcast %22 : i1 to vector<1x256xi1>
    %24 = vector.broadcast %23 : vector<1x256xi1> to vector<1x256xi1>
    %25 = arith.xori %21, %24 : vector<1x256xi1>
    %26 = arith.andi %25, %19 : vector<1x256xi1>
    %27 = vector.broadcast %15 : i32 to vector<1x256xi32>
    %28 = arith.addi %17, %27 : vector<1x256xi32>
    %29 = arith.select %26, %28, %17 : vector<1x256xi1>, vector<1x256xi32>
    %c1_i32_10 = arith.constant 1 : i32
    %30 = vector.broadcast %c1_i32_10 : i32 to vector<1x256xi32>
    %31 = arith.cmpi sge, %29, %30 : vector<1x256xi32>
    %c15_i32 = arith.constant 15 : i32
    %32 = vector.broadcast %c15_i32 : i32 to vector<1x256xi32>
    %33 = arith.cmpi slt, %29, %32 : vector<1x256xi32>
    %34 = vector.extract_strided_slice %12 {offsets = [0, 0], sizes = [8, 256], strides = [1, 1]} : vector<8x290xbf16> to vector<8x256xbf16>
    %cst_11 = arith.constant 0.000000e+00 : bf16
    %35 = vector.broadcast %cst_11 : bf16 to vector<8x256xbf16>
    %36 = vector.shape_cast %31 : vector<1x256xi1> to vector<1x256xi1>
    %37 = vector.broadcast %36 : vector<1x256xi1> to vector<8x256xi1>
    %38 = arith.select %37, %34, %35 : vector<8x256xi1>, vector<8x256xbf16>
    %39 = vector.extract_strided_slice %12 {offsets = [0, 1], sizes = [8, 256], strides = [1, 1]} : vector<8x290xbf16> to vector<8x256xbf16>
    %40 = vector.extract_strided_slice %12 {offsets = [0, 2], sizes = [8, 256], strides = [1, 1]} : vector<8x290xbf16> to vector<8x256xbf16>
    %cst_12 = arith.constant 0.000000e+00 : bf16
    %41 = vector.broadcast %cst_12 : bf16 to vector<8x256xbf16>
    %42 = vector.shape_cast %33 : vector<1x256xi1> to vector<1x256xi1>
    %43 = vector.broadcast %42 : vector<1x256xi1> to vector<8x256xi1>
    %44 = arith.select %43, %40, %41 : vector<8x256xi1>, vector<8x256xbf16>
    %45 = vector.extract_strided_slice %12 {offsets = [0, 16], sizes = [8, 256], strides = [1, 1]} : vector<8x290xbf16> to vector<8x256xbf16>
    %cst_13 = arith.constant 0.000000e+00 : bf16
    %46 = vector.broadcast %cst_13 : bf16 to vector<8x256xbf16>
    %47 = vector.shape_cast %31 : vector<1x256xi1> to vector<1x256xi1>
    %48 = vector.broadcast %47 : vector<1x256xi1> to vector<8x256xi1>
    %49 = arith.select %48, %45, %46 : vector<8x256xi1>, vector<8x256xbf16>
    %50 = vector.extract_strided_slice %12 {offsets = [0, 18], sizes = [8, 256], strides = [1, 1]} : vector<8x290xbf16> to vector<8x256xbf16>
    %cst_14 = arith.constant 0.000000e+00 : bf16
    %51 = vector.broadcast %cst_14 : bf16 to vector<8x256xbf16>
    %52 = vector.shape_cast %33 : vector<1x256xi1> to vector<1x256xi1>
    %53 = vector.broadcast %52 : vector<1x256xi1> to vector<8x256xi1>
    %54 = arith.select %53, %50, %51 : vector<8x256xi1>, vector<8x256xbf16>
    %55 = vector.extract_strided_slice %12 {offsets = [0, 32], sizes = [8, 256], strides = [1, 1]} : vector<8x290xbf16> to vector<8x256xbf16>
    %cst_15 = arith.constant 0.000000e+00 : bf16
    %56 = vector.broadcast %cst_15 : bf16 to vector<8x256xbf16>
    %57 = vector.shape_cast %31 : vector<1x256xi1> to vector<1x256xi1>
    %58 = vector.broadcast %57 : vector<1x256xi1> to vector<8x256xi1>
    %59 = arith.select %58, %55, %56 : vector<8x256xi1>, vector<8x256xbf16>
    %60 = vector.extract_strided_slice %12 {offsets = [0, 33], sizes = [8, 256], strides = [1, 1]} : vector<8x290xbf16> to vector<8x256xbf16>
    %61 = vector.extract_strided_slice %12 {offsets = [0, 34], sizes = [8, 256], strides = [1, 1]} : vector<8x290xbf16> to vector<8x256xbf16>
    %cst_16 = arith.constant 0.000000e+00 : bf16
    %62 = vector.broadcast %cst_16 : bf16 to vector<8x256xbf16>
    %63 = vector.shape_cast %33 : vector<1x256xi1> to vector<1x256xi1>
    %64 = vector.broadcast %63 : vector<1x256xi1> to vector<8x256xi1>
    %65 = arith.select %64, %61, %62 : vector<8x256xi1>, vector<8x256xbf16>
    %66 = tpu.concatenate %38, %39, %44, %49, %10, %54, %59, %60, %65 in 0 : vector<8x256xbf16>, vector<8x256xbf16>, vector<8x256xbf16>, vector<8x256xbf16>, vector<8x256xbf16>, vector<8x256xbf16>, vector<8x256xbf16>, vector<8x256xbf16>, vector<8x256xbf16> -> vector<72x256xbf16>
    %c0_17 = arith.constant 0 : index
    %c0_18 = arith.constant 0 : index
    %67 = vector.load %arg4[%c0_17, %c0_18] : memref<4x72xbf16, #tpu.memory_space<vmem>>, vector<4x72xbf16>
    %cst_19 = arith.constant dense<0.000000e+00> : vector<4x256xf32>
    %68 = tpu.matmul %67, %66, %cst_19 {dimension_numbers = #tpu.dot_dimension_numbers<[1], [0], [0], [1], [0, 0, 1, 1], [], []>} : vector<4x72xbf16>, vector<72x256xbf16>, vector<4x256xf32> -> vector<4x256xf32>
    %c0_20 = arith.constant 0 : index
    %c0_21 = arith.constant 0 : index
    %69 = vector.load %arg5[%c0_20, %c0_21] : memref<4x1xf32, #tpu.memory_space<vmem>>, vector<4x1xf32>
    %70 = vector.broadcast %69 : vector<4x1xf32> to vector<4x256xf32>
    %71 = arith.addf %68, %70 : vector<4x256xf32>
    %c0_22 = arith.constant 0 : index
    %c0_23 = arith.constant 0 : index
    %c0_24 = arith.constant 0 : index
    %72 = vector.load %arg6[%c0_22, %c0_23, %c0_24] : memref<1x4x256xf32, #tpu.memory_space<vmem>>, vector<1x4x256xf32>
    %73 = vector.shape_cast %72 : vector<1x4x256xf32> to vector<4x256xf32>
    %74 = vector.shape_cast %71 : vector<4x256xf32> to vector<1x4x256xf32>
    tpu.vector_store %arg6[%c0_22, %c0_23, %c0_24], %74 {strides = array<i32>} : memref<1x4x256xf32, #tpu.memory_space<vmem>>, vector<1x4x256xf32>,
    %cst_25 = arith.constant dense<0.000000e+00> : vector<4xf32>
    %75 = vector.multi_reduction <add>, %71, %cst_25 [1] : vector<4x256xf32> to vector<4xf32>
    %76 = vector.shape_cast %75 : vector<4xf32> to vector<4x1xf32>
    %c0_26 = arith.constant 0 : index
    %c0_27 = arith.constant 0 : index
    %c0_28 = arith.constant 0 : index
    %77 = vector.load %arg7[%c0_26, %c0_27, %c0_28] : memref<1x4x1xf32, #tpu.memory_space<vmem>>, vector<1x4x1xf32>
    %78 = vector.shape_cast %77 : vector<1x4x1xf32> to vector<4x1xf32>
    %79 = vector.shape_cast %76 : vector<4x1xf32> to vector<1x4x1xf32>
    tpu.vector_store %arg7[%c0_26, %c0_27, %c0_28], %79 {strides = array<i32>} : memref<1x4x1xf32, #tpu.memory_space<vmem>>, vector<1x4x1xf32>,
    %80 = arith.mulf %71, %71 : vector<4x256xf32>
    %cst_29 = arith.constant dense<0.000000e+00> : vector<4xf32>
    %81 = vector.multi_reduction <add>, %80, %cst_29 [1] : vector<4x256xf32> to vector<4xf32>
    %82 = vector.shape_cast %81 : vector<4xf32> to vector<4x1xf32>
    %c0_30 = arith.constant 0 : index
    %c0_31 = arith.constant 0 : index
    %c0_32 = arith.constant 0 : index
    %83 = vector.load %arg8[%c0_30, %c0_31, %c0_32] : memref<1x4x1xf32, #tpu.memory_space<vmem>>, vector<1x4x1xf32>
    %84 = vector.shape_cast %83 : vector<1x4x1xf32> to vector<4x1xf32>
    %85 = vector.shape_cast %82 : vector<4x1xf32> to vector<1x4x1xf32>
    tpu.vector_store %arg8[%c0_30, %c0_31, %c0_32], %85 {strides = array<i32>} : memref<1x4x1xf32, #tpu.memory_space<vmem>>, vector<1x4x1xf32>,
    return
  }
  func.func @transform_0(%arg0: i32) -> (i32, i32) {
    %c0_i32 = arith.constant 0 : i32
    %c0_i32_0 = arith.constant 0 : i32
    %c0_i32_1 = arith.constant 0 : i32
    return %c0_i32, %c0_i32_0 : i32, i32
  }
  func.func @transform_1(%arg0: i32) -> (i32, i32) {
    %c0_i32 = arith.constant 0 : i32
    %c0_i32_0 = arith.constant 0 : i32
    %c0_i32_1 = arith.constant 0 : i32
    return %c0_i32, %c0_i32_0 : i32, i32
  }
  func.func @transform_2(%arg0: i32) -> (i32, i32, i32) {
    %c0_i32 = arith.constant 0 : i32
    %c0_i32_0 = arith.constant 0 : i32
    %c0_i32_1 = arith.constant 0 : i32
    return %arg0, %c0_i32, %c0_i32_0 : i32, i32, i32
  }
  func.func @transform_3(%arg0: i32) -> (i32, i32) {
    %c0_i32 = arith.constant 0 : i32
    %c0_i32_0 = arith.constant 0 : i32
    %c0_i32_1 = arith.constant 0 : i32
    return %c0_i32, %c0_i32_0 : i32, i32
  }
  func.func @transform_4(%arg0: i32) -> (i32, i32) {
    %c0_i32 = arith.constant 0 : i32
    %c0_i32_0 = arith.constant 0 : i32
    %c0_i32_1 = arith.constant 0 : i32
    return %c0_i32, %c0_i32_0 : i32, i32
  }
  func.func @transform_5(%arg0: i32) -> (i32, i32, i32) {
    %c0_i32 = arith.constant 0 : i32
    %c0_i32_0 = arith.constant 0 : i32
    %c0_i32_1 = arith.constant 0 : i32
    return %arg0, %c0_i32, %c0_i32_0 : i32, i32, i32
  }
  func.func @transform_6(%arg0: i32) -> (i32, i32, i32) {
    %c0_i32 = arith.constant 0 : i32
    %c0_i32_0 = arith.constant 0 : i32
    %c0_i32_1 = arith.constant 0 : i32
    return %arg0, %c0_i32, %c0_i32_0 : i32, i32, i32
  }
  func.func @transform_7(%arg0: i32) -> (i32, i32, i32) {
    %c0_i32 = arith.constant 0 : i32
    %c0_i32_0 = arith.constant 0 : i32
    %c0_i32_1 = arith.constant 0 : i32
    return %arg0, %c0_i32, %c0_i32_0 : i32, i32, i32
  }
}

module attributes {stable_mosaic.version = 11 : i64} {
  func.func @_bn_relu_kernel(%arg0: i32, %arg1: i32, %arg2: memref<4x1xf32, #tpu.memory_space<vmem>>, %arg3: memref<4x1xf32, #tpu.memory_space<vmem>>, %arg4: memref<1x4x128xf32, #tpu.memory_space<vmem>>, %arg5: memref<1x4x128xf32, #tpu.memory_space<vmem>>) attributes {dimension_semantics = [#tpu.dimension_semantics<parallel>, #tpu.dimension_semantics<parallel>], iteration_bounds = array<i64: 2, 2>, scalar_prefetch = 0 : i64, scratch_operands = 0 : i64, tpu.core_type = #tpu.core_type<tc>, window_params = [{pipeline_mode = #tpu.pipeline_mode<synchronous>, transform_indices = @transform_0, window_bounds = array<i64: 4, 1>}, {pipeline_mode = #tpu.pipeline_mode<synchronous>, transform_indices = @transform_1, window_bounds = array<i64: 4, 1>}, {transform_indices = @transform_2, window_bounds = array<i64: 1, 4, 128>}, {transform_indices = @transform_3, window_bounds = array<i64: 1, 4, 128>}]} {
    %c0 = arith.constant 0 : index
    %c0_0 = arith.constant 0 : index
    %c0_1 = arith.constant 0 : index
    %0 = vector.load %arg4[%c0, %c0_0, %c0_1] : memref<1x4x128xf32, #tpu.memory_space<vmem>>, vector<1x4x128xf32>
    %1 = vector.shape_cast %0 : vector<1x4x128xf32> to vector<4x128xf32>
    %c0_2 = arith.constant 0 : index
    %c0_3 = arith.constant 0 : index
    %2 = vector.load %arg2[%c0_2, %c0_3] : memref<4x1xf32, #tpu.memory_space<vmem>>, vector<4x1xf32>
    %3 = vector.broadcast %2 : vector<4x1xf32> to vector<4x128xf32>
    %4 = arith.mulf %1, %3 : vector<4x128xf32>
    %c0_4 = arith.constant 0 : index
    %c0_5 = arith.constant 0 : index
    %5 = vector.load %arg3[%c0_4, %c0_5] : memref<4x1xf32, #tpu.memory_space<vmem>>, vector<4x1xf32>
    %6 = vector.broadcast %5 : vector<4x1xf32> to vector<4x128xf32>
    %7 = arith.addf %4, %6 : vector<4x128xf32>
    %cst = arith.constant 0.000000e+00 : f32
    %8 = vector.broadcast %cst : f32 to vector<4x128xf32>
    %9 = arith.maximumf %7, %8 : vector<4x128xf32>
    %c0_6 = arith.constant 0 : index
    %c0_7 = arith.constant 0 : index
    %c0_8 = arith.constant 0 : index
    %10 = vector.load %arg5[%c0_6, %c0_7, %c0_8] : memref<1x4x128xf32, #tpu.memory_space<vmem>>, vector<1x4x128xf32>
    %11 = vector.shape_cast %10 : vector<1x4x128xf32> to vector<4x128xf32>
    %12 = vector.shape_cast %9 : vector<4x128xf32> to vector<1x4x128xf32>
    tpu.vector_store %arg5[%c0_6, %c0_7, %c0_8], %12 {strides = array<i32>} : memref<1x4x128xf32, #tpu.memory_space<vmem>>, vector<1x4x128xf32>,
    return
  }
  func.func @transform_0(%arg0: i32, %arg1: i32) -> (i32, i32) {
    %c0_i32 = arith.constant 0 : i32
    %c0_i32_0 = arith.constant 0 : i32
    %c0_i32_1 = arith.constant 0 : i32
    return %c0_i32, %c0_i32_0 : i32, i32
  }
  func.func @transform_1(%arg0: i32, %arg1: i32) -> (i32, i32) {
    %c0_i32 = arith.constant 0 : i32
    %c0_i32_0 = arith.constant 0 : i32
    %c0_i32_1 = arith.constant 0 : i32
    return %c0_i32, %c0_i32_0 : i32, i32
  }
  func.func @transform_2(%arg0: i32, %arg1: i32) -> (i32, i32, i32) {
    %c0_i32 = arith.constant 0 : i32
    %c0_i32_0 = arith.constant 0 : i32
    return %arg0, %c0_i32, %arg1 : i32, i32, i32
  }
  func.func @transform_3(%arg0: i32, %arg1: i32) -> (i32, i32, i32) {
    %c0_i32 = arith.constant 0 : i32
    %c0_i32_0 = arith.constant 0 : i32
    return %arg0, %c0_i32, %arg1 : i32, i32, i32
  }
}

</mosaic_0001>

<llo_original>
// kernel: conv_block_forward.5
$region0: #{conv_block_forward.5}
  #allocation0 [shape = 'u32[]', space=smem, size = 0x4, offset = 0x4, fixed_abs, tag = 'smem constant byte address 0x4 - core index']
  #allocation1 [shape = 'u32[144,128]{1,0:T(1,128)}', space=vmem, size = 0x12000, scoped, tag = 'internal scratch']
  %s0 = inlined_call_operand.vmem [shape: f32[4,1], index: 0, kind: input, shape index: {}]
  %s1 = inlined_call_operand.vmem [shape: f32[4,1], index: 1, kind: input, shape index: {}]
  %s2 = inlined_call_operand.vmem [shape: f32[2,4,256], index: 2, kind: input, shape index: {}]
  %s3 = inlined_call_operand.vmem [shape: f32[2,4,256], index: 3, kind: output, shape index: {}]
  %s4 = sld [smem:[#allocation0]]
  $region45: #{conv_block_forward.5} parent=0
    _
  %s6 = ssub.s32 1, %s4
  %s7 = scalar_select 0, %s6, %s4
  loop: start=0, step=1, limit=6
  $region2: #{conv_block_forward.5} parent=0 // loop_pre_header
    _
  $region3: #{conv_block_forward.5} parent=0 // loop_header
    %s9 = sphi 0, %s13
    %p10 = scmp.ge.s32.totalorder %s9, 6
    %s16 = sphi 0, %s28
    %s17 = sphi 0, %s24
    %s18 = sphi 0, %s16
    %s19 = sphi 0, %s17
    %s20 = sphi 0, %s18
    %s21 = sphi 0, %s19
    %s29 = sphi 0, %s29
    %s31 = sphi 0, %s29
    %s32 = sphi 0, %s31
    %s46 = sphi 0, %s32
    %s50 = sphi 0, %s50
    %s52 = sphi 0, %s50
    %s53 = sphi 0, %s52
    %s67 = sphi 0, %s53
    %s75 = sphi 0, %s77
    %s78 = sphi 0, %s75
    %s79 = sphi 0, %s78
    %s95 = sphi 0, %s79
    %s103 = sphi 0, %s105
    %s106 = sphi 0, %s103
    %s107 = sphi 0, %s106
    %s123 = sphi 0, %s107
  $region4: #{conv_block_forward.5} parent=0 // loop_header_branch
    %12 = sbr.rel (%p10) target = $region8
  $region5: #{conv_block_forward.5} parent=0 // loop_body
    %s14 = ssub.s32 %s9, 1
    %s15 = ssub.s32 %s9, 2
    %s22 = sadd.s32 1, %s17
    %p23 = scmp.ge.s32.totalorder %s22, 2
    %s24 = scalar_select %p23, 0, %s22
    %s25 = sadd.s32 1, %s16
    %s26 = scalar_select %p23, %s25, %s16
    %p27 = scmp.ge.s32.totalorder %s26, 2
    %s28 = scalar_select %p27, 0, %s26
    %s30 = sadd.s32 %s29, 1
    %p33 = scmp.eq.s32.totalorder %s9, 3
    %p34 = scmp.ne.s32.totalorder %s29, %s31
    %p35 = scmp.eq.s32.totalorder %s9, 0
    %p36 = por %p34, %p35
    %p37 = scmp.ne.s32.totalorder %s29, %s31
    %p38 = scmp.eq.s32.totalorder %s14, 3
    %p39 = por %p37, %p38
    %p40 = scmp.ne.s32.totalorder %s31, %s32
    %p41 = scmp.eq.s32.totalorder %s14, 0
    %p42 = por %p40, %p41
    %p43 = scmp.ne.s32.totalorder %s31, %s32
    %p44 = scmp.eq.s32.totalorder %s15, 3
    %p45 = por %p43, %p44
    %p47 = scmp.ne.s32.totalorder %s32, %s46
    %p48 = scmp.eq.s32.totalorder %s15, 0
    %p49 = por %p47, %p48
    %s51 = sadd.s32 %s50, 1
    %p54 = scmp.eq.s32.totalorder %s9, 3
    %p55 = scmp.ne.s32.totalorder %s50, %s52
    %p56 = scmp.eq.s32.totalorder %s9, 0
    %p57 = por %p55, %p56
    %p58 = scmp.ne.s32.totalorder %s50, %s52
    %p59 = scmp.eq.s32.totalorder %s14, 3
    %p60 = por %p58, %p59
    %p61 = scmp.ne.s32.totalorder %s52, %s53
    %p62 = scmp.eq.s32.totalorder %s14, 0
    %p63 = por %p61, %p62
    %p64 = scmp.ne.s32.totalorder %s52, %s53
    %p65 = scmp.eq.s32.totalorder %s15, 3
    %p66 = por %p64, %p65
    %p68 = scmp.ne.s32.totalorder %s53, %s67
    %p69 = scmp.eq.s32.totalorder %s15, 0
    %p70 = por %p68, %p69
    %s71 = ssub.s32 %s16, %s28
    %s72 = ssub.s32 %s17, %s24
    %s73 = sor.u32 %s71, %s72
    %p74 = scmp.eq.s32.totalorder %s73, 0
    %s76 = sadd.s32 %s75, 1
    %s77 = scalar_select %p74, %s75, %s76
    %p80 = pneg %p74
    %p81 = scmp.eq.s32.totalorder %s9, 3
    %p82 = por %p80, %p81
    %p83 = scmp.ne.s32.totalorder %s75, %s78
    %p84 = scmp.eq.s32.totalorder %s9, 0
    %p85 = por %p83, %p84
    %p86 = scmp.ne.s32.totalorder %s75, %s78
    %p87 = scmp.eq.s32.totalorder %s14, 3
    %p88 = por %p86, %p87
    %p89 = scmp.ne.s32.totalorder %s78, %s79
    %p90 = scmp.eq.s32.totalorder %s14, 0
    %p91 = por %p89, %p90
    %p92 = scmp.ne.s32.totalorder %s78, %s79
    %p93 = scmp.eq.s32.totalorder %s15, 3
    %p94 = por %p92, %p93
    %p96 = scmp.ne.s32.totalorder %s79, %s95
    %p97 = scmp.eq.s32.totalorder %s15, 0
    %p98 = por %p96, %p97
    %s99 = ssub.s32 %s16, %s28
    %s100 = ssub.s32 %s17, %s24
    %s101 = sor.u32 %s99, %s100
    %p102 = scmp.eq.s32.totalorder %s101, 0
    %s104 = sadd.s32 %s103, 1
    %s105 = scalar_select %p102, %s103, %s104
    %p108 = pneg %p102
    %p109 = scmp.eq.s32.totalorder %s9, 3
    %p110 = por %p108, %p109
    %p111 = scmp.ne.s32.totalorder %s103, %s106
    %p112 = scmp.eq.s32.totalorder %s9, 0
    %p113 = por %p111, %p112
    %p114 = scmp.ne.s32.totalorder %s103, %s106
    %p115 = scmp.eq.s32.totalorder %s14, 3
    %p116 = por %p114, %p115
    %p117 = scmp.ne.s32.totalorder %s106, %s107
    %p118 = scmp.eq.s32.totalorder %s14, 0
    %p119 = por %p117, %p118
    %p120 = scmp.ne.s32.totalorder %s106, %s107
    %p121 = scmp.eq.s32.totalorder %s15, 3
    %p122 = por %p120, %p121
    %p124 = scmp.ne.s32.totalorder %s107, %s123
    %p125 = scmp.eq.s32.totalorder %s15, 0
    %p126 = por %p124, %p125
    %p127 = scmp.le.s32.totalorder 1, %s9
    %p128 = scmp.lt.s32.totalorder %s9, 5
    %p129 = pnand %p127, %p128
    %p130 = pneg %p129
    // Predicated region
    $region9: #{conv_block_forward.5} parent=5 // pred_check
      _
    $region10: #{conv_block_forward.5} parent=5 // pred_check_branch
      %132 = sbr.rel (%p129) target = $region12
    $region11: #{conv_block_forward.5} parent=5 // pred_region
      %s133 = ssub.s32 %s9, 1
      // Predicated region
      $region13: #{conv_block_forward.5} parent=11 // pred_check
        %p134 = pneg %p42
      $region14: #{conv_block_forward.5} parent=11 // pred_check_branch
        %136 = sbr.rel (%p134) target = $region16
      $region15: #{conv_block_forward.5} parent=11 // pred_region
        _
      $region16: #{conv_block_forward.5} parent=11 // pred_fallthru
        _
      // Predicated region
      $region17: #{conv_block_forward.5} parent=11 // pred_check
        %p137 = pneg %p63
      $region18: #{conv_block_forward.5} parent=11 // pred_check_branch
        %139 = sbr.rel (%p137) target = $region20
      $region19: #{conv_block_forward.5} parent=11 // pred_region
        _
      $region20: #{conv_block_forward.5} parent=11 // pred_fallthru
        _
    $region12: #{conv_block_forward.5} parent=5 // pred_fallthru
      _
    %p140 = scmp.lt.s32.totalorder %s9, 4
    // Predicated region
    $region21: #{conv_block_forward.5} parent=5 // pred_check
      %p141 = pneg %p140
    $region22: #{conv_block_forward.5} parent=5 // pred_check_branch
      %143 = sbr.rel (%p141) target = $region24
    $region23: #{conv_block_forward.5} parent=5 // pred_region
      // Predicated region
      $region25: #{conv_block_forward.5} parent=23 // pred_check
        %p144 = pneg %p85
      $region26: #{conv_block_forward.5} parent=23 // pred_check_branch
        %146 = sbr.rel (%p144) target = $region28
      $region27: #{conv_block_forward.5} parent=23 // pred_region
        %p147 = scmp.lt.s32.totalorder %s16, 1
        %s148 = scalar_select %p147, %s16, 1
        %p149 = scmp.lt.s32.totalorder %s17, 1
        %s150 = scalar_select %p149, %s17, 1
        %s151 = smul.addr %s148, 2
        %s152 = sadd.s32 %s150, %s151
        %s153 = smul.addr %s152, 4
        %s154 = scalar_lea.vmem %s2, %s153
      $region28: #{conv_block_forward.5} parent=23 // pred_fallthru
        _
    $region24: #{conv_block_forward.5} parent=5 // pred_fallthru
      _
    %p155 = scmp.le.s32.totalorder 1, %s9
    %p156 = scmp.lt.s32.totalorder %s9, 5
    %p157 = pnand %p155, %p156
    %p158 = pneg %p157
    // Predicated region
    $region29: #{conv_block_forward.5} parent=5 // pred_check
      _
    $region30: #{conv_block_forward.5} parent=5 // pred_check_branch
      %160 = sbr.rel (%p157) target = $region32
    $region31: #{conv_block_forward.5} parent=5 // pred_region
      %s161 = ssub.s32 %s9, 1
      %p162 = pneg %p42
      %p163 = pneg %p39
      %p164 = pneg %p63
      %p165 = pneg %p60
      %p166 = scmp.lt.s32.totalorder %s18, 1
      %s167 = scalar_select %p166, %s18, 1
      %p168 = scmp.lt.s32.totalorder %s19, 1
      %s169 = scalar_select %p168, %s19, 1
      %s170 = smul.addr %s167, 2
      %s171 = sadd.s32 %s169, %s170
      %s172 = smul.addr %s171, 4
      %s173 = scalar_lea.vmem %s2, %s172
      %p174 = pneg %p91
      %p175 = pneg %p88
      %p176 = pneg %p119
      %p177 = pneg %p116
      %p178 = scmp.lt.s32.totalorder %s18, 1
      %s179 = scalar_select %p178, %s18, 1
      %p180 = scmp.lt.s32.totalorder %s19, 1
      %s181 = scalar_select %p180, %s19, 1
      %s182 = smul.addr %s179, 2
      %s183 = sadd.s32 %s181, %s182
      %s184 = smul.addr %s183, 4
      %s185 = scalar_lea.vmem %s3, %s184
      %p186 = scmp.lt.s32.totalorder %s18, 1
      %s187 = scalar_select %p186, %s18, 1
      %p188 = scmp.lt.s32.totalorder %s19, 1
      %s189 = scalar_select %p188, %s19, 1
      %s190 = smul.addr %s187, 2
      %s191 = sadd.s32 %s189, %s190
      %s192 = smul.addr %s191, 4
      %s193 = scalar_lea.vmem %s2, %s192
      %p194 = scmp.lt.s32.totalorder %s18, 1
      %s195 = scalar_select %p194, %s18, 1
      %p196 = scmp.lt.s32.totalorder %s19, 1
      %s197 = scalar_select %p196, %s19, 1
      %s198 = smul.addr %s195, 2
      %s199 = sadd.s32 %s197, %s198
      %s200 = smul.addr %s199, 4
      %s201 = scalar_lea.vmem %s3, %s200
      %v202 = vld [vmem:[%s193] sm:$0xf]
      %v203 = vld [vmem:[%s0] sm:$0xf]
      %205 = vset.pattern.permute.xlu0 0
      %206 = vperm.xlu0 %205, %v203
      %v207 = vpop.permute.xlu0 %206
      %v209 = vmul.f32 %v202, %v207
      %v210 = vld [vmem:[%s1] sm:$0xf]
      %212 = vset.pattern.permute.xlu0 0
      %213 = vperm.xlu0 %212, %v210
      %v214 = vpop.permute.xlu0 %213
      %v216 = vadd.f32 %v209, %v214
      %v217 = vmax.f32 %v216, 0.0
      %218 = vst [vmem:[%s201] sm:$0xf] %v217
      %p219 = scmp.lt.s32.totalorder %s18, 1
      %s220 = scalar_select %p219, %s18, 1
      %p221 = scmp.lt.s32.totalorder %s19, 1
      %s222 = scalar_select %p221, %s19, 1
      %s223 = smul.addr %s220, 2
      %s224 = sadd.s32 %s222, %s223
      %s225 = smul.addr %s224, 4
      %s226 = scalar_lea.vmem %s3, %s225
      // Predicated region
      $region33: #{conv_block_forward.5} parent=31 // pred_check
        %p227 = pneg %p116
      $region34: #{conv_block_forward.5} parent=31 // pred_check_branch
        %229 = sbr.rel (%p227) target = $region36
      $region35: #{conv_block_forward.5} parent=31 // pred_region
        _
      $region36: #{conv_block_forward.5} parent=31 // pred_fallthru
        _
    $region32: #{conv_block_forward.5} parent=5 // pred_fallthru
      _
    %p230 = scmp.le.s32.totalorder 2, %s9
    // Predicated region
    $region37: #{conv_block_forward.5} parent=5 // pred_check
      %p231 = pneg %p230
    $region38: #{conv_block_forward.5} parent=5 // pred_check_branch
      %233 = sbr.rel (%p231) target = $region40
    $region39: #{conv_block_forward.5} parent=5 // pred_region
      %s234 = ssub.s32 %s9, 2
      // Predicated region
      $region41: #{conv_block_forward.5} parent=39 // pred_check
        %p235 = pneg %p122
      $region42: #{conv_block_forward.5} parent=39 // pred_check_branch
        %237 = sbr.rel (%p235) target = $region44
      $region43: #{conv_block_forward.5} parent=39 // pred_region
        %p238 = scmp.lt.s32.totalorder %s20, 1
        %s239 = scalar_select %p238, %s20, 1
        %p240 = scmp.lt.s32.totalorder %s21, 1
        %s241 = scalar_select %p240, %s21, 1
        %s242 = smul.addr %s239, 2
        %s243 = sadd.s32 %s241, %s242
        %s244 = smul.addr %s243, 4
        %s245 = scalar_lea.vmem %s3, %s244
      $region44: #{conv_block_forward.5} parent=39 // pred_fallthru
        _
    $region40: #{conv_block_forward.5} parent=5 // pred_fallthru
      _
  $region6: #{conv_block_forward.5} parent=0 // loop_footer
    %s13 = sadd.s32 1, %s9
  $region7: #{conv_block_forward.5} parent=0 // loop_footer_branch
    %8 = sbr.rel target = $region3
  $region8: #{conv_block_forward.5} parent=0 // loop_exit
    _

// kernel: conv_block_forward.3
$region0: #{conv_block_forward.3}
  #allocation0 [shape = 'u32[]', space=smem, size = 0x4, offset = 0x4, fixed_abs, tag = 'smem constant byte address 0x4 - core index']
  #allocation1 [shape = 'u32[144,128]{1,0:T(1,128)}', space=vmem, size = 0x12000, scoped, tag = 'internal scratch']
  %s0 = inlined_call_operand.vmem [shape: bf16[2,4,256], index: 0, kind: input, shape index: {}]
  %s1 = inlined_call_operand.vmem [shape: bf16[8,36], index: 1, kind: input, shape index: {}]
  %s2 = inlined_call_operand.vmem [shape: f32[8,1], index: 2, kind: input, shape index: {}]
  %s3 = inlined_call_operand.vmem [shape: f32[2,8,256], index: 3, kind: output, shape index: {0}]
  %s4 = inlined_call_operand.vmem [shape: f32[2,8,1], index: 4, kind: output, shape index: {1}]
  %s5 = inlined_call_operand.vmem [shape: f32[2,8,1], index: 5, kind: output, shape index: {2}]
  %6 = xla_tuple %s3, %s4, %s5
  %s7 = sld [smem:[#allocation0]]
  $region61: #{conv_block_forward.3} parent=0
    _
  %s9 = ssub.s32 1, %s7
  %s10 = scalar_select 0, %s9, %s7
  loop: start=0, step=1, limit=4
  $region2: #{conv_block_forward.3} parent=0 // loop_pre_header
    _
  $region3: #{conv_block_forward.3} parent=0 // loop_header
    %s12 = sphi 0, %s16
    %p13 = scmp.ge.s32.totalorder %s12, 4
    %s22 = sphi 0, %s24
    %s25 = sphi 0, %s22
    %s26 = sphi 0, %s25
    %s42 = sphi 0, %s26
    %s46 = sphi 0, %s46
    %s48 = sphi 0, %s46
    %s49 = sphi 0, %s48
    %s63 = sphi 0, %s49
    %s67 = sphi 0, %s67
    %s69 = sphi 0, %s67
    %s70 = sphi 0, %s69
    %s84 = sphi 0, %s70
    %s90 = sphi 0, %s92
    %s93 = sphi 0, %s90
    %s94 = sphi 0, %s93
    %s110 = sphi 0, %s94
    %s116 = sphi 0, %s118
    %s119 = sphi 0, %s116
    %s120 = sphi 0, %s119
    %s136 = sphi 0, %s120
    %s142 = sphi 0, %s144
    %s145 = sphi 0, %s142
    %s146 = sphi 0, %s145
    %s162 = sphi 0, %s146
  $region4: #{conv_block_forward.3} parent=0 // loop_header_branch
    %15 = sbr.rel (%p13) target = $region8
  $region5: #{conv_block_forward.3} parent=0 // loop_body
    %s17 = ssub.s32 %s12, 1
    %s18 = ssub.s32 %s12, 2
    %s19 = sadd.s32 %s12, 1
    %s20 = ssub.s32 %s12, %s19
    %p21 = scmp.eq.s32.totalorder %s20, 0
    %s23 = sadd.s32 %s22, 1
    %s24 = scalar_select %p21, %s22, %s23
    %p27 = pneg %p21
    %p28 = scmp.eq.s32.totalorder %s12, 1
    %p29 = por %p27, %p28
    %p30 = scmp.ne.s32.totalorder %s22, %s25
    %p31 = scmp.eq.s32.totalorder %s12, 0
    %p32 = por %p30, %p31
    %p33 = scmp.ne.s32.totalorder %s22, %s25
    %p34 = scmp.eq.s32.totalorder %s17, 1
    %p35 = por %p33, %p34
    %p36 = scmp.ne.s32.totalorder %s25, %s26
    %p37 = scmp.eq.s32.totalorder %s17, 0
    %p38 = por %p36, %p37
    %p39 = scmp.ne.s32.totalorder %s25, %s26
    %p40 = scmp.eq.s32.totalorder %s18, 1
    %p41 = por %p39, %p40
    %p43 = scmp.ne.s32.totalorder %s26, %s42
    %p44 = scmp.eq.s32.totalorder %s18, 0
    %p45 = por %p43, %p44
    %s47 = sadd.s32 %s46, 1
    %p50 = scmp.eq.s32.totalorder %s12, 1
    %p51 = scmp.ne.s32.totalorder %s46, %s48
    %p52 = scmp.eq.s32.totalorder %s12, 0
    %p53 = por %p51, %p52
    %p54 = scmp.ne.s32.totalorder %s46, %s48
    %p55 = scmp.eq.s32.totalorder %s17, 1
    %p56 = por %p54, %p55
    %p57 = scmp.ne.s32.totalorder %s48, %s49
    %p58 = scmp.eq.s32.totalorder %s17, 0
    %p59 = por %p57, %p58
    %p60 = scmp.ne.s32.totalorder %s48, %s49
    %p61 = scmp.eq.s32.totalorder %s18, 1
    %p62 = por %p60, %p61
    %p64 = scmp.ne.s32.totalorder %s49, %s63
    %p65 = scmp.eq.s32.totalorder %s18, 0
    %p66 = por %p64, %p65
    %s68 = sadd.s32 %s67, 1
    %p71 = scmp.eq.s32.totalorder %s12, 1
    %p72 = scmp.ne.s32.totalorder %s67, %s69
    %p73 = scmp.eq.s32.totalorder %s12, 0
    %p74 = por %p72, %p73
    %p75 = scmp.ne.s32.totalorder %s67, %s69
    %p76 = scmp.eq.s32.totalorder %s17, 1
    %p77 = por %p75, %p76
    %p78 = scmp.ne.s32.totalorder %s69, %s70
    %p79 = scmp.eq.s32.totalorder %s17, 0
    %p80 = por %p78, %p79
    %p81 = scmp.ne.s32.totalorder %s69, %s70
    %p82 = scmp.eq.s32.totalorder %s18, 1
    %p83 = por %p81, %p82
    %p85 = scmp.ne.s32.totalorder %s70, %s84
    %p86 = scmp.eq.s32.totalorder %s18, 0
    %p87 = por %p85, %p86
    %s88 = ssub.s32 %s12, %s19
    %p89 = scmp.eq.s32.totalorder %s88, 0
    %s91 = sadd.s32 %s90, 1
    %s92 = scalar_select %p89, %s90, %s91
    %p95 = pneg %p89
    %p96 = scmp.eq.s32.totalorder %s12, 1
    %p97 = por %p95, %p96
    %p98 = scmp.ne.s32.totalorder %s90, %s93
    %p99 = scmp.eq.s32.totalorder %s12, 0
    %p100 = por %p98, %p99
    %p101 = scmp.ne.s32.totalorder %s90, %s93
    %p102 = scmp.eq.s32.totalorder %s17, 1
    %p103 = por %p101, %p102
    %p104 = scmp.ne.s32.totalorder %s93, %s94
    %p105 = scmp.eq.s32.totalorder %s17, 0
    %p106 = por %p104, %p105
    %p107 = scmp.ne.s32.totalorder %s93, %s94
    %p108 = scmp.eq.s32.totalorder %s18, 1
    %p109 = por %p107, %p108
    %p111 = scmp.ne.s32.totalorder %s94, %s110
    %p112 = scmp.eq.s32.totalorder %s18, 0
    %p113 = por %p111, %p112
    %s114 = ssub.s32 %s12, %s19
    %p115 = scmp.eq.s32.totalorder %s114, 0
    %s117 = sadd.s32 %s116, 1
    %s118 = scalar_select %p115, %s116, %s117
    %p121 = pneg %p115
    %p122 = scmp.eq.s32.totalorder %s12, 1
    %p123 = por %p121, %p122
    %p124 = scmp.ne.s32.totalorder %s116, %s119
    %p125 = scmp.eq.s32.totalorder %s12, 0
    %p126 = por %p124, %p125
    %p127 = scmp.ne.s32.totalorder %s116, %s119
    %p128 = scmp.eq.s32.totalorder %s17, 1
    %p129 = por %p127, %p128
    %p130 = scmp.ne.s32.totalorder %s119, %s120
    %p131 = scmp.eq.s32.totalorder %s17, 0
    %p132 = por %p130, %p131
    %p133 = scmp.ne.s32.totalorder %s119, %s120
    %p134 = scmp.eq.s32.totalorder %s18, 1
    %p135 = por %p133, %p134
    %p137 = scmp.ne.s32.totalorder %s120, %s136
    %p138 = scmp.eq.s32.totalorder %s18, 0
    %p139 = por %p137, %p138
    %s140 = ssub.s32 %s12, %s19
    %p141 = scmp.eq.s32.totalorder %s140, 0
    %s143 = sadd.s32 %s142, 1
    %s144 = scalar_select %p141, %s142, %s143
    %p147 = pneg %p141
    %p148 = scmp.eq.s32.totalorder %s12, 1
    %p149 = por %p147, %p148
    %p150 = scmp.ne.s32.totalorder %s142, %s145
    %p151 = scmp.eq.s32.totalorder %s12, 0
    %p152 = por %p150, %p151
    %p153 = scmp.ne.s32.totalorder %s142, %s145
    %p154 = scmp.eq.s32.totalorder %s17, 1
    %p155 = por %p153, %p154
    %p156 = scmp.ne.s32.totalorder %s145, %s146
    %p157 = scmp.eq.s32.totalorder %s17, 0
    %p158 = por %p156, %p157
    %p159 = scmp.ne.s32.totalorder %s145, %s146
    %p160 = scmp.eq.s32.totalorder %s18, 1
    %p161 = por %p159, %p160
    %p163 = scmp.ne.s32.totalorder %s146, %s162
    %p164 = scmp.eq.s32.totalorder %s18, 0
    %p165 = por %p163, %p164
    %p166 = scmp.le.s32.totalorder 1, %s12
    %p167 = scmp.lt.s32.totalorder %s12, 3
    %p168 = pnand %p166, %p167
    %p169 = pneg %p168
    // Predicated region
    $region9: #{conv_block_forward.3} parent=5 // pred_check
      _
    $region10: #{conv_block_forward.3} parent=5 // pred_check_branch
      %171 = sbr.rel (%p168) target = $region12
    $region11: #{conv_block_forward.3} parent=5 // pred_region
      %s172 = ssub.s32 %s12, 1
      // Predicated region
      $region13: #{conv_block_forward.3} parent=11 // pred_check
        %p173 = pneg %p59
      $region14: #{conv_block_forward.3} parent=11 // pred_check_branch
        %175 = sbr.rel (%p173) target = $region16
      $region15: #{conv_block_forward.3} parent=11 // pred_region
        _
      $region16: #{conv_block_forward.3} parent=11 // pred_fallthru
        _
      // Predicated region
      $region17: #{conv_block_forward.3} parent=11 // pred_check
        %p176 = pneg %p80
      $region18: #{conv_block_forward.3} parent=11 // pred_check_branch
        %178 = sbr.rel (%p176) target = $region20
      $region19: #{conv_block_forward.3} parent=11 // pred_region
        _
      $region20: #{conv_block_forward.3} parent=11 // pred_fallthru
        _
    $region12: #{conv_block_forward.3} parent=5 // pred_fallthru
      _
    %p179 = scmp.lt.s32.totalorder %s12, 2
    // Predicated region
    $region21: #{conv_block_forward.3} parent=5 // pred_check
      %p180 = pneg %p179
    $region22: #{conv_block_forward.3} parent=5 // pred_check_branch
      %182 = sbr.rel (%p180) target = $region24
    $region23: #{conv_block_forward.3} parent=5 // pred_region
      // Predicated region
      $region25: #{conv_block_forward.3} parent=23 // pred_check
        %p183 = pneg %p32
      $region26: #{conv_block_forward.3} parent=23 // pred_check_branch
        %185 = sbr.rel (%p183) target = $region28
      $region27: #{conv_block_forward.3} parent=23 // pred_region
        %p186 = scmp.lt.s32.totalorder %s12, 1
        %s187 = scalar_select %p186, %s12, 1
        %s188 = smul.addr %s187, 2
        %s189 = smul.addr %s188, 2
        %s190 = scalar_lea.vmem %s0, %s189
      $region28: #{conv_block_forward.3} parent=23 // pred_fallthru
        _
    $region24: #{conv_block_forward.3} parent=5 // pred_fallthru
      _
    %p191 = scmp.le.s32.totalorder 1, %s12
    %p192 = scmp.lt.s32.totalorder %s12, 3
    %p193 = pnand %p191, %p192
    %p194 = pneg %p193
    // Predicated region
    $region29: #{conv_block_forward.3} parent=5 // pred_check
      _
    $region30: #{conv_block_forward.3} parent=5 // pred_check_branch
      %196 = sbr.rel (%p193) target = $region32
    $region31: #{conv_block_forward.3} parent=5 // pred_region
      %s197 = ssub.s32 %s12, 1
      %p198 = scmp.lt.s32.totalorder %s17, 1
      %s199 = scalar_select %p198, %s17, 1
      %s200 = smul.addr %s199, 2
      %s201 = smul.addr %s200, 2
      %s202 = scalar_lea.vmem %s0, %s201
      %p203 = pneg %p38
      %p204 = pneg %p35
      %p205 = pneg %p59
      %p206 = pneg %p56
      %p207 = pneg %p80
      %p208 = pneg %p77
      %p209 = pneg %p106
      %p210 = pneg %p103
      %p211 = scmp.lt.s32.totalorder %s17, 1
      %s212 = scalar_select %p211, %s17, 1
      %s213 = smul.addr %s212, 2
      %s214 = smul.addr %s213, 8
      %s215 = scalar_lea.vmem %s3, %s214
      %p216 = pneg %p132
      %p217 = pneg %p129
      %p218 = scmp.lt.s32.totalorder %s17, 1
      %s219 = scalar_select %p218, %s17, 1
      %s220 = smul.addr %s219, 8
      %s221 = scalar_lea.vmem %s4, %s220
      %p222 = pneg %p158
      %p223 = pneg %p155
      %p224 = scmp.lt.s32.totalorder %s17, 1
      %s225 = scalar_select %p224, %s17, 1
      %s226 = smul.addr %s225, 8
      %s227 = scalar_lea.vmem %s5, %s226
      %p228 = scmp.lt.s32.totalorder %s17, 1
      %s229 = scalar_select %p228, %s17, 1
      %s230 = smul.addr %s229, 2
      %s231 = smul.addr %s230, 2
      %s232 = scalar_lea.vmem %s0, %s231
      %p233 = scmp.lt.s32.totalorder %s17, 1
      %s234 = scalar_select %p233, %s17, 1
      %s235 = smul.addr %s234, 2
      %s236 = smul.addr %s235, 8
      %s237 = scalar_lea.vmem %s3, %s236
      %p238 = scmp.lt.s32.totalorder %s17, 1
      %s239 = scalar_select %p238, %s17, 1
      %s240 = smul.addr %s239, 8
      %s241 = scalar_lea.vmem %s4, %s240
      %p242 = scmp.lt.s32.totalorder %s17, 1
      %s243 = scalar_select %p242, %s17, 1
      %s244 = smul.addr %s243, 8
      %s245 = scalar_lea.vmem %s5, %s244
      %v249 = vld [vmem:[%s232] sm:$0xf]
      %v252 = vunpack.c.l.s4 1983009808
      %v253 = vunpack.c.0.s8 %v252
      %v254 = vlaneseq
      %v255 = vshrl.u32 %v254, 7
      %v256 = vsub.s32 %v253, %v255
      %v257 = vrot.slane %v249, %v256
      %v258 = vcombine.high %v257, %v257
      %259 = vrot.lane.b32.xlu0 %v257, 17
      %v260 = vpop.permute.xlu0 %259
      %261 = vrot.lane.b32.xlu0 %v258, 17
      %v262 = vpop.permute.xlu0 %261
      %vm263 = vcmask 138240
      %v264 = vsel %vm263, %v260, %v262
      %vm266 = vcmask 138240
      %v269 = vsel %vm266, 0, %v260
      %v272 = vsel %vm266, %v262, 0
      %v274 = vlaneseq
      %v275 = vand.u32 %v274, 127
      %v276 = vadd.s32 %v275, 128
      %vm277 = vcmp.lt.s32.totalorder %v275, 0
      %v278 = vsub.s32 0, %v275
      %v279 = vsel %vm277, %v278, %v275
      %v280 = vshrl.u32 %v279, 4
      %v281 = vand.u32 %v279, 15
      %v282 = vsub.s32 0, %v281
      %v283 = vsel %vm277, %v282, %v281
      %vm284 = vcmp.lt.s32.totalorder %v276, 0
      %v285 = vsub.s32 0, %v276
      %v286 = vsel %vm284, %v285, %v276
      %v287 = vshrl.u32 %v286, 4
      %v288 = vand.u32 %v286, 15
      %v289 = vsub.s32 0, %v288
      %v290 = vsel %vm284, %v289, %v288
      %vm291 = vcmp.ne.s32.totalorder %v283, 0
      %vm292 = vcmp.ne.s32.totalorder %v290, 0
      %vm293 = vcmp.lt.s32.totalorder %v283, 0
      %vm294 = vcmp.lt.s32.totalorder %v290, 0
      %vm295 = vmand %vm293, %vm291
      %vm296 = vmand %vm294, %vm292
      %v297 = vadd.s32 %v283, 16
      %v298 = vadd.s32 %v290, 16
      %v299 = vsel %vm295, %v297, %v283
      %v300 = vsel %vm296, %v298, %v290
      %vm301 = vcmp.ge.s32.totalorder %v299, 1
      %vm302 = vcmp.ge.s32.totalorder %v300, 1
      %vm303 = vcmp.lt.s32.totalorder %v299, 15
      %vm304 = vcmp.lt.s32.totalorder %v300, 15
      %v305 = vsel %vm301, 1, 0
      %v306 = vsel %vm302, 1, 0
      %vm307 = vcmp.eq.s32.totalorder %v305, 1
      %vm308 = vcmp.eq.s32.totalorder %v306, 1
      %vm309 = vmpackc.low %vm308, %vm307
      %v310 = vsel %vm309, 65537, 0
      %v311 = vlaneseq
      %v312 = vshrl.u32 %v311, 7
      %v313 = vsub.s32 0, %v312
      %v314 = vrot.slane %v310, %v313
      %v315 = vlaneseq
      %v316 = vshrl.u32 %v315, 7
      %v317 = vsub.s32 4, %v316
      %v318 = vrot.slane %v310, %v317
      %vm319 = vcmp.ne.s16.totalorder %v314, 0
      %vm320 = vcmp.ne.s16.totalorder %v318, 0
      %v321 = vsel %vm319, %v269, 0
      %v322 = vsel %vm320, %v264, 0
      %v323 = vsel %vm303, 1, 0
      %v324 = vsel %vm304, 1, 0
      %vm325 = vcmp.eq.s32.totalorder %v323, 1
      %vm326 = vcmp.eq.s32.totalorder %v324, 1
      %vm327 = vmpackc.low %vm326, %vm325
      %v328 = vsel %vm327, 65537, 0
      %v329 = vlaneseq
      %v330 = vshrl.u32 %v329, 7
      %v331 = vsub.s32 0, %v330
      %v332 = vrot.slane %v328, %v331
      %v333 = vlaneseq
      %v334 = vshrl.u32 %v333, 7
      %v335 = vsub.s32 4, %v334
      %v336 = vrot.slane %v328, %v335
      %337 = vrot.lane.b32.xlu0 %v332, 2
      %v338 = vpop.permute.xlu0 %337
      %339 = vrot.lane.b32.xlu0 %v336, 2
      %v340 = vpop.permute.xlu0 %339
      %vm341 = vcmask 15360
      %v342 = vsel %vm341, %v338, %v340
      %vm343 = vcmp.ne.s16.totalorder %v338, 0
      %vm344 = vcmp.ne.s16.totalorder %v342, 0
      %vm345 = vcmp.ne.s16.totalorder %v340, 0
      %v346 = vsel %vm343, %v269, 0
      %v347 = vsel %vm344, %v264, 0
      %v348 = vsel %vm345, %v272, 0
      %349 = vrot.lane.b32.xlu0 %v314, 16
      %v350 = vpop.permute.xlu0 %349
      %351 = vrot.lane.b32.xlu0 %v318, 16
      %v352 = vpop.permute.xlu0 %351
      %vm353 = vcmask 130048
      %v354 = vsel %vm353, %v350, %v352
      %vm355 = vcmp.ne.s16.totalorder %v350, 0
      %vm356 = vcmp.ne.s16.totalorder %v354, 0
      %vm357 = vcmp.ne.s16.totalorder %v352, 0
      %v358 = vsel %vm355, %v269, 0
      %v359 = vsel %vm356, %v264, 0
      %v360 = vsel %vm357, %v272, 0
      %361 = vrot.lane.b32.xlu0 %v332, 18
      %v362 = vpop.permute.xlu0 %361
      %363 = vrot.lane.b32.xlu0 %v336, 18
      %v364 = vpop.permute.xlu0 %363
      %vm365 = vcmask 146432
      %v366 = vsel %vm365, %v362, %v364
      %vm367 = vcmp.ne.s16.totalorder %v362, 0
      %vm368 = vcmp.ne.s16.totalorder %v366, 0
      %vm369 = vcmp.ne.s16.totalorder %v364, 0
      %v370 = vsel %vm367, %v269, 0
      %v371 = vsel %vm368, %v264, 0
      %v372 = vsel %vm369, %v272, 0
      %373 = vrot.lane.b32.xlu0 %v314, 32
      %v374 = vpop.permute.xlu0 %373
      %375 = vrot.lane.b32.xlu0 %v318, 32
      %v376 = vpop.permute.xlu0 %375
      %vm377 = vcmask 261120
      %v378 = vsel %vm377, %v374, %v376
      %vm379 = vcmp.ne.s16.totalorder %v374, 0
      %vm380 = vcmp.ne.s16.totalorder %v378, 0
      %vm381 = vcmp.ne.s16.totalorder %v376, 0
      %v382 = vsel %vm379, %v269, 0
      %v383 = vsel %vm380, %v264, 0
      %v384 = vsel %vm381, %v272, 0
      %385 = vrot.lane.b32.xlu0 %v332, 34
      %v386 = vpop.permute.xlu0 %385
      %387 = vrot.lane.b32.xlu0 %v336, 34
      %v388 = vpop.permute.xlu0 %387
      %vm389 = vcmask 277504
      %v390 = vsel %vm389, %v386, %v388
      %vm391 = vcmp.ne.s16.totalorder %v386, 0
      %vm392 = vcmp.ne.s16.totalorder %v390, 0
      %vm393 = vcmp.ne.s16.totalorder %v388, 0
      %v394 = vsel %vm391, %v269, 0
      %v395 = vsel %vm392, %v264, 0
      %v396 = vsel %vm393, %v272, 0
      %v399 = vrot.slane %v269, 6
      %v400 = vrot.slane %v264, 6
      %v401 = vrot.slane %v272, 6
      %402 = vrot.lane.b32.xlu0 %v399, 127
      %v403 = vpop.permute.xlu0 %402
      %404 = vrot.lane.b32.xlu0 %v400, 127
      %v405 = vpop.permute.xlu0 %404
      %406 = vrot.lane.b32.xlu0 %v401, 127
      %v407 = vpop.permute.xlu0 %406
      %vm408 = vcmask 1039360
      %v409 = vsel %vm408, %v403, %v405
      %v410 = vsel %vm408, %v405, %v407
      %v414 = vrot.slane %v346, 4
      %v415 = vrot.slane %v347, 4
      %v416 = vrot.slane %v348, 4
      %417 = vrot.lane.b32.xlu0 %v414, 126
      %v418 = vpop.permute.xlu0 %417
      %419 = vrot.lane.b32.xlu0 %v415, 126
      %v420 = vpop.permute.xlu0 %419
      %421 = vrot.lane.b32.xlu0 %v416, 126
      %v422 = vpop.permute.xlu0 %421
      %vm423 = vcmask 1031168
      %v424 = vsel %vm423, %v418, %v420
      %v425 = vsel %vm423, %v420, %v422
      %v429 = vrot.slane %v358, 2
      %v430 = vrot.slane %v359, 2
      %v431 = vrot.slane %v360, 2
      %432 = vrot.lane.b32.xlu0 %v429, 112
      %v433 = vpop.permute.xlu0 %432
      %434 = vrot.lane.b32.xlu0 %v430, 112
      %v435 = vpop.permute.xlu0 %434
      %436 = vrot.lane.b32.xlu0 %v431, 112
      %v437 = vpop.permute.xlu0 %436
      %vm438 = vcmask 916480
      %v439 = vsel %vm438, %v433, %v435
      %v440 = vsel %vm438, %v435, %v437
      %v444 = vrot.slane %v370, 6
      %v445 = vrot.slane %v371, 6
      %v446 = vrot.slane %v372, 6
      %447 = vrot.lane.b32.xlu0 %v444, 110
      %v448 = vpop.permute.xlu0 %447
      %449 = vrot.lane.b32.xlu0 %v445, 110
      %v450 = vpop.permute.xlu0 %449
      %451 = vrot.lane.b32.xlu0 %v446, 110
      %v452 = vpop.permute.xlu0 %451
      %vm453 = vcmask 900096
      %v454 = vsel %vm453, %v448, %v450
      %v455 = vsel %vm453, %v450, %v452
      %v459 = vrot.slane %v382, 4
      %v460 = vrot.slane %v383, 4
      %v461 = vrot.slane %v384, 4
      %462 = vrot.lane.b32.xlu0 %v459, 96
      %v463 = vpop.permute.xlu0 %462
      %464 = vrot.lane.b32.xlu0 %v460, 96
      %v465 = vpop.permute.xlu0 %464
      %466 = vrot.lane.b32.xlu0 %v461, 96
      %v467 = vpop.permute.xlu0 %466
      %vm468 = vcmask 785408
      %v469 = vsel %vm468, %v463, %v465
      %v470 = vsel %vm468, %v465, %v467
      %v471 = vrot.slane %v269, 2
      %v472 = vrot.slane %v264, 2
      %v473 = vrot.slane %v272, 2
      %474 = vrot.lane.b32.xlu0 %v471, 95
      %v475 = vpop.permute.xlu0 %474
      %476 = vrot.lane.b32.xlu0 %v472, 95
      %v477 = vpop.permute.xlu0 %476
      %478 = vrot.lane.b32.xlu0 %v473, 95
      %v479 = vpop.permute.xlu0 %478
      %vm480 = vcmask 777216
      %v481 = vsel %vm480, %v475, %v477
      %v482 = vsel %vm480, %v477, %v479
      %486 = vrot.lane.b32.xlu0 %v394, 94
      %v487 = vpop.permute.xlu0 %486
      %488 = vrot.lane.b32.xlu0 %v395, 94
      %v489 = vpop.permute.xlu0 %488
      %490 = vrot.lane.b32.xlu0 %v396, 94
      %v491 = vpop.permute.xlu0 %490
      %vm492 = vcmask 769024
      %v493 = vsel %vm492, %v487, %v489
      %v494 = vsel %vm492, %v489, %v491
      %vm495 = vcmask 1041408
      %v498 = vsel %vm495, %v321, %v409
      %v501 = vsel %vm495, %v322, %v410
      %vm502 = vcmask 1043456
      %v504 = vsel %vm502, %v498, %v424
      %v506 = vsel %vm502, %v501, %v425
      %vm507 = vcmask 1045504
      %v509 = vsel %vm507, %v504, %v439
      %v512 = vsel %vm507, %v506, %v440
      %v516 = vsel %vm495, %v257, %v454
      %v519 = vsel %vm495, %v258, %v455
      %v521 = vsel %vm502, %v516, %v469
      %v523 = vsel %vm502, %v519, %v470
      %v525 = vsel %vm507, %v521, %v481
      %v528 = vsel %vm507, %v523, %v482
      %v530 = vld [vmem:[%s1] sm:$0xf]
      %v531 = vld [vmem:[%s2] sm:$0xff]
      %533 = vset.pattern.permute.xlu0 0
      %534 = vperm.xlu0 %533, %v531
      %v535 = vpop.permute.xlu0 %534
      %vm537 = vcmask 293888
      %v539 = vsel %vm537, %v530, 0
      %v542 = vsel %vm495, %v493, 0
      %v545 = vsel %vm495, %v494, 0
      %547 = vmatprep.subr.bf16.mxu0 %v512
      %548 = vmatpush1.bf16.msra.mxu0 %v509
      %549 = vmatprep.subr.bf16.mxu0 %v528
      %550 = vmatpush1.bf16.msra.mxu0 %v525
      %551 = vmatprep.subr.bf16.mxu0 %v545
      %552 = vmatpush1.bf16.msra.mxu0 %v542
      %553 = vmatprep.subr.bf16.mxu0 0
      %554 = vmatpush1.bf16.msra.mxu0 0
      %555 = vmatprep.subr.bf16.mxu0 0
      %556 = vmatpush1.bf16.msra.mxu0 0
      %557 = vmatprep.subr.bf16.mxu0 0
      %558 = vmatpush1.bf16.msra.mxu0 0
      %559 = vmatprep.subr.bf16.mxu0 0
      %560 = vmatpush1.bf16.msra.mxu0 0
      %561 = vmatprep.subr.bf16.mxu0 0
      %562 = vmatpush1.bf16.msra.mxu0 0
      %563 = vmatprep.subr.bf16.mxu0 0
      %564 = vmatpush1.bf16.msra.mxu0 0
      %565 = vmatprep.subr.bf16.mxu0 0
      %566 = vmatpush1.bf16.msra.mxu0 0
      %567 = vmatprep.subr.bf16.mxu0 0
      %568 = vmatpush1.bf16.msra.mxu0 0
      %569 = vmatprep.subr.bf16.mxu0 0
      %570 = vmatpush1.bf16.msra.mxu0 0
      %571 = vmatprep.subr.bf16.mxu0 0
      %572 = vmatpush1.bf16.msra.mxu0 0
      %573 = vmatprep.subr.bf16.mxu0 0
      %574 = vmatpush1.bf16.msra.mxu0 0
      %575 = vmatprep.subr.bf16.mxu0 0
      %576 = vmatpush1.bf16.msra.mxu0 0
      %577 = vmatprep.subr.bf16.mxu0 0
      %578 = vmatpush1.bf16.msra.mxu0 0
      %579 = vmatprep.mubr.bf16.mxu0 0
      %580 = vmatmul.mubr.bf16.gmra.mrb[0].mxu0 %v539
      %v581 = vpop.f32.mrb[0].mxu0
      %v582 = vadd.f32 %v535, %v581
      %v583 = vpop.f32.mrb[0].mxu0
      %v584 = vadd.f32 %v535, %v583
      %v585 = vpop.f32.mrb[0].mxu0
      %v586 = vpop.f32.mrb[0].mxu0
      %587 = vdwg.mxu0
      %588 = vst [vmem:[%s237] sm:$0xff] %v582
      %589 = vst [vmem:[%s237 + $0x8] sm:$0xff] %v584
      %v590 = vadd.f32 %v582, %v584
      %591 = vadd.xlane.f32.xlu0 %v590
      %v592 = vpop.xlane.xlu0 %591
      %vm593 = vcmask 7168
      %594 = vst.msk [vmem:[%s241] sm:$0xff] %vm593, %v592
      %v595 = vmul.f32 %v582, %v582
      %v596 = vmul.f32 %v584, %v584
      %v597 = vadd.f32 %v595, %v596
      %598 = vadd.xlane.f32.xlu0 %v597
      %v599 = vpop.xlane.xlu0 %598
      %600 = vst.msk [vmem:[%s245] sm:$0xff] %vm593, %v599
      %p601 = scmp.lt.s32.totalorder %s17, 1
      %s602 = scalar_select %p601, %s17, 1
      %s603 = smul.addr %s602, 2
      %s604 = smul.addr %s603, 8
      %s605 = scalar_lea.vmem %s3, %s604
      %p606 = scmp.lt.s32.totalorder %s17, 1
      %s607 = scalar_select %p606, %s17, 1
      %s608 = smul.addr %s607, 8
      %s609 = scalar_lea.vmem %s4, %s608
      %p610 = scmp.lt.s32.totalorder %s17, 1
      %s611 = scalar_select %p610, %s17, 1
      %s612 = smul.addr %s611, 8
      %s613 = scalar_lea.vmem %s5, %s612
      // Predicated region
      $region33: #{conv_block_forward.3} parent=31 // pred_check
        %p614 = pneg %p103
      $region34: #{conv_block_forward.3} parent=31 // pred_check_branch
        %616 = sbr.rel (%p614) target = $region36
      $region35: #{conv_block_forward.3} parent=31 // pred_region
        _
      $region36: #{conv_block_forward.3} parent=31 // pred_fallthru
        _
      // Predicated region
      $region37: #{conv_block_forward.3} parent=31 // pred_check
        %p617 = pneg %p129
      $region38: #{conv_block_forward.3} parent=31 // pred_check_branch
        %619 = sbr.rel (%p617) target = $region40
      $region39: #{conv_block_forward.3} parent=31 // pred_region
        _
      $region40: #{conv_block_forward.3} parent=31 // pred_fallthru
        _
      // Predicated region
      $region41: #{conv_block_forward.3} parent=31 // pred_check
        %p620 = pneg %p155
      $region42: #{conv_block_forward.3} parent=31 // pred_check_branch
        %622 = sbr.rel (%p620) target = $region44
      $region43: #{conv_block_forward.3} parent=31 // pred_region
        _
      $region44: #{conv_block_forward.3} parent=31 // pred_fallthru
        _
    $region32: #{conv_block_forward.3} parent=5 // pred_fallthru
      _
    %p623 = scmp.le.s32.totalorder 2, %s12
    // Predicated region
    $region45: #{conv_block_forward.3} parent=5 // pred_check
      %p624 = pneg %p623
    $region46: #{conv_block_forward.3} parent=5 // pred_check_branch
      %626 = sbr.rel (%p624) target = $region48
    $region47: #{conv_block_forward.3} parent=5 // pred_region
      %s627 = ssub.s32 %s12, 2
      // Predicated region
      $region49: #{conv_block_forward.3} parent=47 // pred_check
        %p628 = pneg %p109
      $region50: #{conv_block_forward.3} parent=47 // pred_check_branch
        %630 = sbr.rel (%p628) target = $region52
      $region51: #{conv_block_forward.3} parent=47 // pred_region
        %p631 = scmp.lt.s32.totalorder %s18, 1
        %s632 = scalar_select %p631, %s18, 1
        %s633 = smul.addr %s632, 2
        %s634 = smul.addr %s633, 8
        %s635 = scalar_lea.vmem %s3, %s634
      $region52: #{conv_block_forward.3} parent=47 // pred_fallthru
        _
      // Predicated region
      $region53: #{conv_block_forward.3} parent=47 // pred_check
        %p636 = pneg %p135
      $region54: #{conv_block_forward.3} parent=47 // pred_check_branch
        %638 = sbr.rel (%p636) target = $region56
      $region55: #{conv_block_forward.3} parent=47 // pred_region
        %p639 = scmp.lt.s32.totalorder %s18, 1
        %s640 = scalar_select %p639, %s18, 1
        %s641 = smul.addr %s640, 8
        %s642 = scalar_lea.vmem %s4, %s641
      $region56: #{conv_block_forward.3} parent=47 // pred_fallthru
        _
      // Predicated region
      $region57: #{conv_block_forward.3} parent=47 // pred_check
        %p643 = pneg %p161
      $region58: #{conv_block_forward.3} parent=47 // pred_check_branch
        %645 = sbr.rel (%p643) target = $region60
      $region59: #{conv_block_forward.3} parent=47 // pred_region
        %p646 = scmp.lt.s32.totalorder %s18, 1
        %s647 = scalar_select %p646, %s18, 1
        %s648 = smul.addr %s647, 8
        %s649 = scalar_lea.vmem %s5, %s648
      $region60: #{conv_block_forward.3} parent=47 // pred_fallthru
        _
    $region48: #{conv_block_forward.3} parent=5 // pred_fallthru
      _
  $region6: #{conv_block_forward.3} parent=0 // loop_footer
    %s16 = sadd.s32 1, %s12
  $region7: #{conv_block_forward.3} parent=0 // loop_footer_branch
    %11 = sbr.rel target = $region3
  $region8: #{conv_block_forward.3} parent=0 // loop_exit
    _

// kernel: conv_block_forward.4
$region0: #{conv_block_forward.4}
  #allocation0 [shape = 'u32[]', space=smem, size = 0x4, offset = 0x4, fixed_abs, tag = 'smem constant byte address 0x4 - core index']
  #allocation1 [shape = 'u32[144,128]{1,0:T(1,128)}', space=vmem, size = 0x12000, scoped, tag = 'internal scratch']
  %s0 = inlined_call_operand.vmem [shape: f32[8,1], index: 0, kind: input, shape index: {}]
  %s1 = inlined_call_operand.vmem [shape: f32[8,1], index: 1, kind: input, shape index: {}]
  %s2 = inlined_call_operand.vmem [shape: f32[2,8,256], index: 2, kind: input, shape index: {}]
  %s3 = inlined_call_operand.vmem [shape: bf16[4,72], index: 3, kind: input, shape index: {}]
  %s4 = inlined_call_operand.vmem [shape: f32[4,1], index: 4, kind: input, shape index: {}]
  %s5 = inlined_call_operand.vmem [shape: f32[2,4,256], index: 5, kind: output, shape index: {0}]
  %s6 = inlined_call_operand.vmem [shape: f32[2,4,1], index: 6, kind: output, shape index: {1}]
  %s7 = inlined_call_operand.vmem [shape: f32[2,4,1], index: 7, kind: output, shape index: {2}]
  %8 = xla_tuple %s5, %s6, %s7
  %s9 = sld [smem:[#allocation0]]
  $region69: #{conv_block_forward.4} parent=0
    _
  %s11 = ssub.s32 1, %s9
  %s12 = scalar_select 0, %s11, %s9
  loop: start=0, step=1, limit=4
  $region2: #{conv_block_forward.4} parent=0 // loop_pre_header
    _
  $region3: #{conv_block_forward.4} parent=0 // loop_header
    %s14 = sphi 0, %s18
    %p15 = scmp.ge.s32.totalorder %s14, 4
    %s22 = sphi 0, %s22
    %s24 = sphi 0, %s22
    %s25 = sphi 0, %s24
    %s39 = sphi 0, %s25
    %s43 = sphi 0, %s43
    %s45 = sphi 0, %s43
    %s46 = sphi 0, %s45
    %s60 = sphi 0, %s46
    %s66 = sphi 0, %s68
    %s69 = sphi 0, %s66
    %s70 = sphi 0, %s69
    %s86 = sphi 0, %s70
    %s90 = sphi 0, %s90
    %s92 = sphi 0, %s90
    %s93 = sphi 0, %s92
    %s107 = sphi 0, %s93
    %s111 = sphi 0, %s111
    %s113 = sphi 0, %s111
    %s114 = sphi 0, %s113
    %s128 = sphi 0, %s114
    %s134 = sphi 0, %s136
    %s137 = sphi 0, %s134
    %s138 = sphi 0, %s137
    %s154 = sphi 0, %s138
    %s160 = sphi 0, %s162
    %s163 = sphi 0, %s160
    %s164 = sphi 0, %s163
    %s180 = sphi 0, %s164
    %s186 = sphi 0, %s188
    %s189 = sphi 0, %s186
    %s190 = sphi 0, %s189
    %s206 = sphi 0, %s190
  $region4: #{conv_block_forward.4} parent=0 // loop_header_branch
    %17 = sbr.rel (%p15) target = $region8
  $region5: #{conv_block_forward.4} parent=0 // loop_body
    %s19 = ssub.s32 %s14, 1
    %s20 = ssub.s32 %s14, 2
    %s21 = sadd.s32 %s14, 1
    %s23 = sadd.s32 %s22, 1
    %p26 = scmp.eq.s32.totalorder %s14, 1
    %p27 = scmp.ne.s32.totalorder %s22, %s24
    %p28 = scmp.eq.s32.totalorder %s14, 0
    %p29 = por %p27, %p28
    %p30 = scmp.ne.s32.totalorder %s22, %s24
    %p31 = scmp.eq.s32.totalorder %s19, 1
    %p32 = por %p30, %p31
    %p33 = scmp.ne.s32.totalorder %s24, %s25
    %p34 = scmp.eq.s32.totalorder %s19, 0
    %p35 = por %p33, %p34
    %p36 = scmp.ne.s32.totalorder %s24, %s25
    %p37 = scmp.eq.s32.totalorder %s20, 1
    %p38 = por %p36, %p37
    %p40 = scmp.ne.s32.totalorder %s25, %s39
    %p41 = scmp.eq.s32.totalorder %s20, 0
    %p42 = por %p40, %p41
    %s44 = sadd.s32 %s43, 1
    %p47 = scmp.eq.s32.totalorder %s14, 1
    %p48 = scmp.ne.s32.totalorder %s43, %s45
    %p49 = scmp.eq.s32.totalorder %s14, 0
    %p50 = por %p48, %p49
    %p51 = scmp.ne.s32.totalorder %s43, %s45
    %p52 = scmp.eq.s32.totalorder %s19, 1
    %p53 = por %p51, %p52
    %p54 = scmp.ne.s32.totalorder %s45, %s46
    %p55 = scmp.eq.s32.totalorder %s19, 0
    %p56 = por %p54, %p55
    %p57 = scmp.ne.s32.totalorder %s45, %s46
    %p58 = scmp.eq.s32.totalorder %s20, 1
    %p59 = por %p57, %p58
    %p61 = scmp.ne.s32.totalorder %s46, %s60
    %p62 = scmp.eq.s32.totalorder %s20, 0
    %p63 = por %p61, %p62
    %s64 = ssub.s32 %s14, %s21
    %p65 = scmp.eq.s32.totalorder %s64, 0
    %s67 = sadd.s32 %s66, 1
    %s68 = scalar_select %p65, %s66, %s67
    %p71 = pneg %p65
    %p72 = scmp.eq.s32.totalorder %s14, 1
    %p73 = por %p71, %p72
    %p74 = scmp.ne.s32.totalorder %s66, %s69
    %p75 = scmp.eq.s32.totalorder %s14, 0
    %p76 = por %p74, %p75
    %p77 = scmp.ne.s32.totalorder %s66, %s69
    %p78 = scmp.eq.s32.totalorder %s19, 1
    %p79 = por %p77, %p78
    %p80 = scmp.ne.s32.totalorder %s69, %s70
    %p81 = scmp.eq.s32.totalorder %s19, 0
    %p82 = por %p80, %p81
    %p83 = scmp.ne.s32.totalorder %s69, %s70
    %p84 = scmp.eq.s32.totalorder %s20, 1
    %p85 = por %p83, %p84
    %p87 = scmp.ne.s32.totalorder %s70, %s86
    %p88 = scmp.eq.s32.totalorder %s20, 0
    %p89 = por %p87, %p88
    %s91 = sadd.s32 %s90, 1
    %p94 = scmp.eq.s32.totalorder %s14, 1
    %p95 = scmp.ne.s32.totalorder %s90, %s92
    %p96 = scmp.eq.s32.totalorder %s14, 0
    %p97 = por %p95, %p96
    %p98 = scmp.ne.s32.totalorder %s90, %s92
    %p99 = scmp.eq.s32.totalorder %s19, 1
    %p100 = por %p98, %p99
    %p101 = scmp.ne.s32.totalorder %s92, %s93
    %p102 = scmp.eq.s32.totalorder %s19, 0
    %p103 = por %p101, %p102
    %p104 = scmp.ne.s32.totalorder %s92, %s93
    %p105 = scmp.eq.s32.totalorder %s20, 1
    %p106 = por %p104, %p105
    %p108 = scmp.ne.s32.totalorder %s93, %s107
    %p109 = scmp.eq.s32.totalorder %s20, 0
    %p110 = por %p108, %p109
    %s112 = sadd.s32 %s111, 1
    %p115 = scmp.eq.s32.totalorder %s14, 1
    %p116 = scmp.ne.s32.totalorder %s111, %s113
    %p117 = scmp.eq.s32.totalorder %s14, 0
    %p118 = por %p116, %p117
    %p119 = scmp.ne.s32.totalorder %s111, %s113
    %p120 = scmp.eq.s32.totalorder %s19, 1
    %p121 = por %p119, %p120
    %p122 = scmp.ne.s32.totalorder %s113, %s114
    %p123 = scmp.eq.s32.totalorder %s19, 0
    %p124 = por %p122, %p123
    %p125 = scmp.ne.s32.totalorder %s113, %s114
    %p126 = scmp.eq.s32.totalorder %s20, 1
    %p127 = por %p125, %p126
    %p129 = scmp.ne.s32.totalorder %s114, %s128
    %p130 = scmp.eq.s32.totalorder %s20, 0
    %p131 = por %p129, %p130
    %s132 = ssub.s32 %s14, %s21
    %p133 = scmp.eq.s32.totalorder %s132, 0
    %s135 = sadd.s32 %s134, 1
    %s136 = scalar_select %p133, %s134, %s135
    %p139 = pneg %p133
    %p140 = scmp.eq.s32.totalorder %s14, 1
    %p141 = por %p139, %p140
    %p142 = scmp.ne.s32.totalorder %s134, %s137
    %p143 = scmp.eq.s32.totalorder %s14, 0
    %p144 = por %p142, %p143
    %p145 = scmp.ne.s32.totalorder %s134, %s137
    %p146 = scmp.eq.s32.totalorder %s19, 1
    %p147 = por %p145, %p146
    %p148 = scmp.ne.s32.totalorder %s137, %s138
    %p149 = scmp.eq.s32.totalorder %s19, 0
    %p150 = por %p148, %p149
    %p151 = scmp.ne.s32.totalorder %s137, %s138
    %p152 = scmp.eq.s32.totalorder %s20, 1
    %p153 = por %p151, %p152
    %p155 = scmp.ne.s32.totalorder %s138, %s154
    %p156 = scmp.eq.s32.totalorder %s20, 0
    %p157 = por %p155, %p156
    %s158 = ssub.s32 %s14, %s21
    %p159 = scmp.eq.s32.totalorder %s158, 0
    %s161 = sadd.s32 %s160, 1
    %s162 = scalar_select %p159, %s160, %s161
    %p165 = pneg %p159
    %p166 = scmp.eq.s32.totalorder %s14, 1
    %p167 = por %p165, %p166
    %p168 = scmp.ne.s32.totalorder %s160, %s163
    %p169 = scmp.eq.s32.totalorder %s14, 0
    %p170 = por %p168, %p169
    %p171 = scmp.ne.s32.totalorder %s160, %s163
    %p172 = scmp.eq.s32.totalorder %s19, 1
    %p173 = por %p171, %p172
    %p174 = scmp.ne.s32.totalorder %s163, %s164
    %p175 = scmp.eq.s32.totalorder %s19, 0
    %p176 = por %p174, %p175
    %p177 = scmp.ne.s32.totalorder %s163, %s164
    %p178 = scmp.eq.s32.totalorder %s20, 1
    %p179 = por %p177, %p178
    %p181 = scmp.ne.s32.totalorder %s164, %s180
    %p182 = scmp.eq.s32.totalorder %s20, 0
    %p183 = por %p181, %p182
    %s184 = ssub.s32 %s14, %s21
    %p185 = scmp.eq.s32.totalorder %s184, 0
    %s187 = sadd.s32 %s186, 1
    %s188 = scalar_select %p185, %s186, %s187
    %p191 = pneg %p185
    %p192 = scmp.eq.s32.totalorder %s14, 1
    %p193 = por %p191, %p192
    %p194 = scmp.ne.s32.totalorder %s186, %s189
    %p195 = scmp.eq.s32.totalorder %s14, 0
    %p196 = por %p194, %p195
    %p197 = scmp.ne.s32.totalorder %s186, %s189
    %p198 = scmp.eq.s32.totalorder %s19, 1
    %p199 = por %p197, %p198
    %p200 = scmp.ne.s32.totalorder %s189, %s190
    %p201 = scmp.eq.s32.totalorder %s19, 0
    %p202 = por %p200, %p201
    %p203 = scmp.ne.s32.totalorder %s189, %s190
    %p204 = scmp.eq.s32.totalorder %s20, 1
    %p205 = por %p203, %p204
    %p207 = scmp.ne.s32.totalorder %s190, %s206
    %p208 = scmp.eq.s32.totalorder %s20, 0
    %p209 = por %p207, %p208
    %p210 = scmp.le.s32.totalorder 1, %s14
    %p211 = scmp.lt.s32.totalorder %s14, 3
    %p212 = pnand %p210, %p211
    %p213 = pneg %p212
    // Predicated region
    $region9: #{conv_block_forward.4} parent=5 // pred_check
      _
    $region10: #{conv_block_forward.4} parent=5 // pred_check_branch
      %215 = sbr.rel (%p212) target = $region12
    $region11: #{conv_block_forward.4} parent=5 // pred_region
      %s216 = ssub.s32 %s14, 1
      // Predicated region
      $region13: #{conv_block_forward.4} parent=11 // pred_check
        %p217 = pneg %p35
      $region14: #{conv_block_forward.4} parent=11 // pred_check_branch
        %219 = sbr.rel (%p217) target = $region16
      $region15: #{conv_block_forward.4} parent=11 // pred_region
        _
      $region16: #{conv_block_forward.4} parent=11 // pred_fallthru
        _
      // Predicated region
      $region17: #{conv_block_forward.4} parent=11 // pred_check
        %p220 = pneg %p56
      $region18: #{conv_block_forward.4} parent=11 // pred_check_branch
        %222 = sbr.rel (%p220) target = $region20
      $region19: #{conv_block_forward.4} parent=11 // pred_region
        _
      $region20: #{conv_block_forward.4} parent=11 // pred_fallthru
        _
      // Predicated region
      $region21: #{conv_block_forward.4} parent=11 // pred_check
        %p223 = pneg %p103
      $region22: #{conv_block_forward.4} parent=11 // pred_check_branch
        %225 = sbr.rel (%p223) target = $region24
      $region23: #{conv_block_forward.4} parent=11 // pred_region
        _
      $region24: #{conv_block_forward.4} parent=11 // pred_fallthru
        _
      // Predicated region
      $region25: #{conv_block_forward.4} parent=11 // pred_check
        %p226 = pneg %p124
      $region26: #{conv_block_forward.4} parent=11 // pred_check_branch
        %228 = sbr.rel (%p226) target = $region28
      $region27: #{conv_block_forward.4} parent=11 // pred_region
        _
      $region28: #{conv_block_forward.4} parent=11 // pred_fallthru
        _
    $region12: #{conv_block_forward.4} parent=5 // pred_fallthru
      _
    %p229 = scmp.lt.s32.totalorder %s14, 2
    // Predicated region
    $region29: #{conv_block_forward.4} parent=5 // pred_check
      %p230 = pneg %p229
    $region30: #{conv_block_forward.4} parent=5 // pred_check_branch
      %232 = sbr.rel (%p230) target = $region32
    $region31: #{conv_block_forward.4} parent=5 // pred_region
      // Predicated region
      $region33: #{conv_block_forward.4} parent=31 // pred_check
        %p233 = pneg %p76
      $region34: #{conv_block_forward.4} parent=31 // pred_check_branch
        %235 = sbr.rel (%p233) target = $region36
      $region35: #{conv_block_forward.4} parent=31 // pred_region
        %p236 = scmp.lt.s32.totalorder %s14, 1
        %s237 = scalar_select %p236, %s14, 1
        %s238 = smul.addr %s237, 2
        %s239 = smul.addr %s238, 8
        %s240 = scalar_lea.vmem %s2, %s239
      $region36: #{conv_block_forward.4} parent=31 // pred_fallthru
        _
    $region32: #{conv_block_forward.4} parent=5 // pred_fallthru
      _
    %p241 = scmp.le.s32.totalorder 1, %s14
    %p242 = scmp.lt.s32.totalorder %s14, 3
    %p243 = pnand %p241, %p242
    %p244 = pneg %p243
    // Predicated region
    $region37: #{conv_block_forward.4} parent=5 // pred_check
      _
    $region38: #{conv_block_forward.4} parent=5 // pred_check_branch
      %246 = sbr.rel (%p243) target = $region40
    $region39: #{conv_block_forward.4} parent=5 // pred_region
      %s247 = ssub.s32 %s14, 1
      %p248 = pneg %p35
      %p249 = pneg %p32
      %p250 = pneg %p56
      %p251 = pneg %p53
      %p252 = scmp.lt.s32.totalorder %s19, 1
      %s253 = scalar_select %p252, %s19, 1
      %s254 = smul.addr %s253, 2
      %s255 = smul.addr %s254, 8
      %s256 = scalar_lea.vmem %s2, %s255
      %p257 = pneg %p82
      %p258 = pneg %p79
      %p259 = pneg %p103
      %p260 = pneg %p100
      %p261 = pneg %p124
      %p262 = pneg %p121
      %p263 = pneg %p150
      %p264 = pneg %p147
      %p265 = scmp.lt.s32.totalorder %s19, 1
      %s266 = scalar_select %p265, %s19, 1
      %s267 = smul.addr %s266, 2
      %s268 = smul.addr %s267, 4
      %s269 = scalar_lea.vmem %s5, %s268
      %p270 = pneg %p176
      %p271 = pneg %p173
      %p272 = scmp.lt.s32.totalorder %s19, 1
      %s273 = scalar_select %p272, %s19, 1
      %s274 = smul.addr %s273, 4
      %s275 = scalar_lea.vmem %s6, %s274
      %p276 = pneg %p202
      %p277 = pneg %p199
      %p278 = scmp.lt.s32.totalorder %s19, 1
      %s279 = scalar_select %p278, %s19, 1
      %s280 = smul.addr %s279, 4
      %s281 = scalar_lea.vmem %s7, %s280
      %p282 = scmp.lt.s32.totalorder %s19, 1
      %s283 = scalar_select %p282, %s19, 1
      %s284 = smul.addr %s283, 2
      %s285 = smul.addr %s284, 8
      %s286 = scalar_lea.vmem %s2, %s285
      %p287 = scmp.lt.s32.totalorder %s19, 1
      %s288 = scalar_select %p287, %s19, 1
      %s289 = smul.addr %s288, 2
      %s290 = smul.addr %s289, 4
      %s291 = scalar_lea.vmem %s5, %s290
      %p292 = scmp.lt.s32.totalorder %s19, 1
      %s293 = scalar_select %p292, %s19, 1
      %s294 = smul.addr %s293, 4
      %s295 = scalar_lea.vmem %s6, %s294
      %p296 = scmp.lt.s32.totalorder %s19, 1
      %s297 = scalar_select %p296, %s19, 1
      %s298 = smul.addr %s297, 4
      %s299 = scalar_lea.vmem %s7, %s298
      %v303 = vld [vmem:[%s286] sm:$0xff]
      %v304 = vld [vmem:[%s286 + $0x8] sm:$0xff]
      %v305 = vld [vmem:[%s0] sm:$0xff]
      %307 = vset.pattern.permute.xlu0 0
      %308 = vperm.xlu0 %307, %v305
      %v309 = vpop.permute.xlu0 %308
      %v311 = vmul.f32 %v303, %v309
      %v312 = vmul.f32 %v304, %v309
      %v313 = vld [vmem:[%s1] sm:$0xff]
      %315 = vset.pattern.permute.xlu0 0
      %316 = vperm.xlu0 %315, %v313
      %v317 = vpop.permute.xlu0 %316
      %v319 = vadd.f32 %v311, %v317
      %v320 = vadd.f32 %v312, %v317
      %v321 = vmax.f32 %v319, 0.0
      %v322 = vmax.f32 %v320, 0.0
      %v323 = vpack.c.bf16 %v321, %v321
      %v324 = vpack.c.bf16 %v322, %v322
      %327 = vrot.lane.b32.xlu0 %v323, 17
      %v328 = vpop.permute.xlu0 %327
      %329 = vrot.lane.b32.xlu0 %v324, 17
      %v330 = vpop.permute.xlu0 %329
      %vm331 = vcmask 138240
      %v332 = vsel %vm331, %v328, %v330
      %vm334 = vcmask 138240
      %v337 = vsel %vm334, 0, %v328
      %v340 = vsel %vm334, %v330, 0
      %v342 = vlaneseq
      %v343 = vand.u32 %v342, 127
      %v344 = vadd.s32 %v343, 128
      %vm345 = vcmp.lt.s32.totalorder %v343, 0
      %v346 = vsub.s32 0, %v343
      %v347 = vsel %vm345, %v346, %v343
      %v348 = vshrl.u32 %v347, 4
      %v349 = vand.u32 %v347, 15
      %v350 = vsub.s32 0, %v349
      %v351 = vsel %vm345, %v350, %v349
      %vm352 = vcmp.lt.s32.totalorder %v344, 0
      %v353 = vsub.s32 0, %v344
      %v354 = vsel %vm352, %v353, %v344
      %v355 = vshrl.u32 %v354, 4
      %v356 = vand.u32 %v354, 15
      %v357 = vsub.s32 0, %v356
      %v358 = vsel %vm352, %v357, %v356
      %vm359 = vcmp.ne.s32.totalorder %v351, 0
      %vm360 = vcmp.ne.s32.totalorder %v358, 0
      %vm361 = vcmp.lt.s32.totalorder %v351, 0
      %vm362 = vcmp.lt.s32.totalorder %v358, 0
      %vm363 = vmand %vm361, %vm359
      %vm364 = vmand %vm362, %vm360
      %v365 = vadd.s32 %v351, 16
      %v366 = vadd.s32 %v358, 16
      %v367 = vsel %vm363, %v365, %v351
      %v368 = vsel %vm364, %v366, %v358
      %vm369 = vcmp.ge.s32.totalorder %v367, 1
      %vm370 = vcmp.ge.s32.totalorder %v368, 1
      %vm371 = vcmp.lt.s32.totalorder %v367, 15
      %vm372 = vcmp.lt.s32.totalorder %v368, 15
      %v373 = vsel %vm369, 1, 0
      %v374 = vsel %vm370, 1, 0
      %vm375 = vcmp.eq.s32.totalorder %v373, 1
      %vm376 = vcmp.eq.s32.totalorder %v374, 1
      %vm377 = vmpackc.low %vm376, %vm375
      %v378 = vsel %vm377, 65537, 0
      %v379 = vlaneseq
      %v380 = vshrl.u32 %v379, 7
      %v381 = vsub.s32 0, %v380
      %v382 = vrot.slane %v378, %v381
      %v383 = vlaneseq
      %v384 = vshrl.u32 %v383, 7
      %v385 = vsub.s32 4, %v384
      %v386 = vrot.slane %v378, %v385
      %vm387 = vcmp.ne.s16.totalorder %v382, 0
      %vm388 = vcmp.ne.s16.totalorder %v386, 0
      %v389 = vsel %vm387, %v337, 0
      %v390 = vsel %vm388, %v332, 0
      %v391 = vsel %vm371, 1, 0
      %v392 = vsel %vm372, 1, 0
      %vm393 = vcmp.eq.s32.totalorder %v391, 1
      %vm394 = vcmp.eq.s32.totalorder %v392, 1
      %vm395 = vmpackc.low %vm394, %vm393
      %v396 = vsel %vm395, 65537, 0
      %v397 = vlaneseq
      %v398 = vshrl.u32 %v397, 7
      %v399 = vsub.s32 0, %v398
      %v400 = vrot.slane %v396, %v399
      %v401 = vlaneseq
      %v402 = vshrl.u32 %v401, 7
      %v403 = vsub.s32 4, %v402
      %v404 = vrot.slane %v396, %v403
      %405 = vrot.lane.b32.xlu0 %v400, 2
      %v406 = vpop.permute.xlu0 %405
      %407 = vrot.lane.b32.xlu0 %v404, 2
      %v408 = vpop.permute.xlu0 %407
      %vm409 = vcmask 15360
      %v410 = vsel %vm409, %v406, %v408
      %vm411 = vcmp.ne.s16.totalorder %v406, 0
      %vm412 = vcmp.ne.s16.totalorder %v410, 0
      %vm413 = vcmp.ne.s16.totalorder %v408, 0
      %v414 = vsel %vm411, %v337, 0
      %v415 = vsel %vm412, %v332, 0
      %v416 = vsel %vm413, %v340, 0
      %417 = vrot.lane.b32.xlu0 %v382, 16
      %v418 = vpop.permute.xlu0 %417
      %419 = vrot.lane.b32.xlu0 %v386, 16
      %v420 = vpop.permute.xlu0 %419
      %vm421 = vcmask 130048
      %v422 = vsel %vm421, %v418, %v420
      %vm423 = vcmp.ne.s16.totalorder %v418, 0
      %vm424 = vcmp.ne.s16.totalorder %v422, 0
      %vm425 = vcmp.ne.s16.totalorder %v420, 0
      %v426 = vsel %vm423, %v337, 0
      %v427 = vsel %vm424, %v332, 0
      %v428 = vsel %vm425, %v340, 0
      %429 = vrot.lane.b32.xlu0 %v400, 18
      %v430 = vpop.permute.xlu0 %429
      %431 = vrot.lane.b32.xlu0 %v404, 18
      %v432 = vpop.permute.xlu0 %431
      %vm433 = vcmask 146432
      %v434 = vsel %vm433, %v430, %v432
      %vm435 = vcmp.ne.s16.totalorder %v430, 0
      %vm436 = vcmp.ne.s16.totalorder %v434, 0
      %vm437 = vcmp.ne.s16.totalorder %v432, 0
      %v438 = vsel %vm435, %v337, 0
      %v439 = vsel %vm436, %v332, 0
      %v440 = vsel %vm437, %v340, 0
      %441 = vrot.lane.b32.xlu0 %v382, 32
      %v442 = vpop.permute.xlu0 %441
      %443 = vrot.lane.b32.xlu0 %v386, 32
      %v444 = vpop.permute.xlu0 %443
      %vm445 = vcmask 261120
      %v446 = vsel %vm445, %v442, %v444
      %vm447 = vcmp.ne.s16.totalorder %v442, 0
      %vm448 = vcmp.ne.s16.totalorder %v446, 0
      %vm449 = vcmp.ne.s16.totalorder %v444, 0
      %v450 = vsel %vm447, %v337, 0
      %v451 = vsel %vm448, %v332, 0
      %v452 = vsel %vm449, %v340, 0
      %453 = vrot.lane.b32.xlu0 %v400, 34
      %v454 = vpop.permute.xlu0 %453
      %455 = vrot.lane.b32.xlu0 %v404, 34
      %v456 = vpop.permute.xlu0 %455
      %vm457 = vcmask 277504
      %v458 = vsel %vm457, %v454, %v456
      %vm459 = vcmp.ne.s16.totalorder %v454, 0
      %vm460 = vcmp.ne.s16.totalorder %v458, 0
      %vm461 = vcmp.ne.s16.totalorder %v456, 0
      %v462 = vsel %vm459, %v337, 0
      %v463 = vsel %vm460, %v332, 0
      %v464 = vsel %vm461, %v340, 0
      %v467 = vrot.slane %v337, 4
      %v468 = vrot.slane %v332, 4
      %v469 = vrot.slane %v340, 4
      %470 = vrot.lane.b32.xlu0 %v467, 127
      %v471 = vpop.permute.xlu0 %470
      %472 = vrot.lane.b32.xlu0 %v468, 127
      %v473 = vpop.permute.xlu0 %472
      %474 = vrot.lane.b32.xlu0 %v469, 127
      %v475 = vpop.permute.xlu0 %474
      %vm476 = vcmask 1039360
      %v477 = vsel %vm476, %v471, %v473
      %v478 = vsel %vm476, %v473, %v475
      %482 = vrot.lane.b32.xlu0 %v414, 126
      %v483 = vpop.permute.xlu0 %482
      %484 = vrot.lane.b32.xlu0 %v415, 126
      %v485 = vpop.permute.xlu0 %484
      %486 = vrot.lane.b32.xlu0 %v416, 126
      %v487 = vpop.permute.xlu0 %486
      %vm488 = vcmask 1031168
      %v489 = vsel %vm488, %v483, %v485
      %v490 = vsel %vm488, %v485, %v487
      %v494 = vrot.slane %v426, 4
      %v495 = vrot.slane %v427, 4
      %v496 = vrot.slane %v428, 4
      %497 = vrot.lane.b32.xlu0 %v494, 112
      %v498 = vpop.permute.xlu0 %497
      %499 = vrot.lane.b32.xlu0 %v495, 112
      %v500 = vpop.permute.xlu0 %499
      %501 = vrot.lane.b32.xlu0 %v496, 112
      %v502 = vpop.permute.xlu0 %501
      %vm503 = vcmask 916480
      %v504 = vsel %vm503, %v498, %v500
      %v505 = vsel %vm503, %v500, %v502
      %v509 = vrot.slane %v438, 4
      %v510 = vrot.slane %v439, 4
      %v511 = vrot.slane %v440, 4
      %512 = vrot.lane.b32.xlu0 %v509, 110
      %v513 = vpop.permute.xlu0 %512
      %514 = vrot.lane.b32.xlu0 %v510, 110
      %v515 = vpop.permute.xlu0 %514
      %516 = vrot.lane.b32.xlu0 %v511, 110
      %v517 = vpop.permute.xlu0 %516
      %vm518 = vcmask 900096
      %v519 = vsel %vm518, %v513, %v515
      %v520 = vsel %vm518, %v515, %v517
      %524 = vrot.lane.b32.xlu0 %v450, 96
      %v525 = vpop.permute.xlu0 %524
      %526 = vrot.lane.b32.xlu0 %v451, 96
      %v527 = vpop.permute.xlu0 %526
      %528 = vrot.lane.b32.xlu0 %v452, 96
      %v529 = vpop.permute.xlu0 %528
      %vm530 = vcmask 785408
      %v531 = vsel %vm530, %v525, %v527
      %v532 = vsel %vm530, %v527, %v529
      %533 = vrot.lane.b32.xlu0 %v467, 95
      %v534 = vpop.permute.xlu0 %533
      %535 = vrot.lane.b32.xlu0 %v468, 95
      %v536 = vpop.permute.xlu0 %535
      %537 = vrot.lane.b32.xlu0 %v469, 95
      %v538 = vpop.permute.xlu0 %537
      %vm539 = vcmask 777216
      %v540 = vsel %vm539, %v534, %v536
      %v541 = vsel %vm539, %v536, %v538
      %545 = vrot.lane.b32.xlu0 %v462, 94
      %v546 = vpop.permute.xlu0 %545
      %547 = vrot.lane.b32.xlu0 %v463, 94
      %v548 = vpop.permute.xlu0 %547
      %549 = vrot.lane.b32.xlu0 %v464, 94
      %v550 = vpop.permute.xlu0 %549
      %vm551 = vcmask 769024
      %v552 = vsel %vm551, %v546, %v548
      %v553 = vsel %vm551, %v548, %v550
      %vm554 = vcmask 1043456
      %v557 = vsel %vm554, %v389, %v477
      %v561 = vsel %vm554, %v390, %v478
      %v565 = vsel %vm554, %v489, %v504
      %v569 = vsel %vm554, %v490, %v505
      %v573 = vsel %vm554, %v323, %v519
      %v577 = vsel %vm554, %v324, %v520
      %v581 = vsel %vm554, %v531, %v540
      %v585 = vsel %vm554, %v532, %v541
      %v587 = vld [vmem:[%s3] sm:$0x3]
      %v588 = vld [vmem:[%s4] sm:$0xf]
      %590 = vset.pattern.permute.xlu0 0
      %591 = vperm.xlu0 %590, %v588
      %v592 = vpop.permute.xlu0 %591
      %vm594 = vcmask 588800
      %v596 = vsel %vm594, %v587, 0
      %v599 = vsel %vm554, %v552, 0
      %v602 = vsel %vm554, %v553, 0
      %604 = vmatprep.subr.bf16.mxu0 %v561
      %605 = vmatpush1.bf16.msra.mxu0 %v557
      %606 = vmatprep.subr.bf16.mxu0 %v569
      %607 = vmatpush1.bf16.msra.mxu0 %v565
      %608 = vmatprep.subr.bf16.mxu0 %v577
      %609 = vmatpush1.bf16.msra.mxu0 %v573
      %610 = vmatprep.subr.bf16.mxu0 %v585
      %611 = vmatpush1.bf16.msra.mxu0 %v581
      %612 = vmatprep.subr.bf16.mxu0 %v602
      %613 = vmatpush1.bf16.msra.mxu0 %v599
      %614 = vmatprep.subr.bf16.mxu0 0
      %615 = vmatpush1.bf16.msra.mxu0 0
      %616 = vmatprep.subr.bf16.mxu0 0
      %617 = vmatpush1.bf16.msra.mxu0 0
      %618 = vmatprep.subr.bf16.mxu0 0
      %619 = vmatpush1.bf16.msra.mxu0 0
      %620 = vmatprep.subr.bf16.mxu0 0
      %621 = vmatpush1.bf16.msra.mxu0 0
      %622 = vmatprep.subr.bf16.mxu0 0
      %623 = vmatpush1.bf16.msra.mxu0 0
      %624 = vmatprep.subr.bf16.mxu0 0
      %625 = vmatpush1.bf16.msra.mxu0 0
      %626 = vmatprep.subr.bf16.mxu0 0
      %627 = vmatpush1.bf16.msra.mxu0 0
      %628 = vmatprep.subr.bf16.mxu0 0
      %629 = vmatpush1.bf16.msra.mxu0 0
      %630 = vmatprep.subr.bf16.mxu0 0
      %631 = vmatpush1.bf16.msra.mxu0 0
      %632 = vmatprep.subr.bf16.mxu0 0
      %633 = vmatpush1.bf16.msra.mxu0 0
      %634 = vmatprep.subr.bf16.mxu0 0
      %635 = vmatpush1.bf16.msra.mxu0 0
      %636 = vmatprep.mubr.bf16.mxu0 0
      %637 = vmatmul.mubr.bf16.gmra.mrb[0].mxu0 %v596
      %v638 = vpop.f32.mrb[0].mxu0
      %v639 = vadd.f32 %v592, %v638
      %v640 = vpop.f32.mrb[0].mxu0
      %v641 = vadd.f32 %v592, %v640
      %v642 = vpop.f32.mrb[0].mxu0
      %v643 = vpop.f32.mrb[0].mxu0
      %644 = vdwg.mxu0
      %v647 = vcombine.low %v639, %v641
      %649 = vst [vmem:[%s291] sm:$0xff] %v647
      %v650 = vsel %vm554, %v639, 0.0
      %v651 = vsel %vm554, %v641, 0.0
      %v652 = vadd.f32 %v650, %v651
      %653 = vadd.xlane.f32.xlu0 %v652
      %v654 = vpop.xlane.xlu0 %653
      %vm655 = vcmask 3072
      %656 = vst.msk [vmem:[%s295] sm:$0xf] %vm655, %v654
      %v657 = vmul.f32 %v639, %v639
      %v658 = vmul.f32 %v641, %v641
      %v659 = vsel %vm554, %v657, 0.0
      %v660 = vsel %vm554, %v658, 0.0
      %v661 = vadd.f32 %v659, %v660
      %662 = vadd.xlane.f32.xlu0 %v661
      %v663 = vpop.xlane.xlu0 %662
      %664 = vst.msk [vmem:[%s299] sm:$0xf] %vm655, %v663
      %p665 = scmp.lt.s32.totalorder %s19, 1
      %s666 = scalar_select %p665, %s19, 1
      %s667 = smul.addr %s666, 2
      %s668 = smul.addr %s667, 4
      %s669 = scalar_lea.vmem %s5, %s668
      %p670 = scmp.lt.s32.totalorder %s19, 1
      %s671 = scalar_select %p670, %s19, 1
      %s672 = smul.addr %s671, 4
      %s673 = scalar_lea.vmem %s6, %s672
      %p674 = scmp.lt.s32.totalorder %s19, 1
      %s675 = scalar_select %p674, %s19, 1
      %s676 = smul.addr %s675, 4
      %s677 = scalar_lea.vmem %s7, %s676
      // Predicated region
      $region41: #{conv_block_forward.4} parent=39 // pred_check
        %p678 = pneg %p147
      $region42: #{conv_block_forward.4} parent=39 // pred_check_branch
        %680 = sbr.rel (%p678) target = $region44
      $region43: #{conv_block_forward.4} parent=39 // pred_region
        _
      $region44: #{conv_block_forward.4} parent=39 // pred_fallthru
        _
      // Predicated region
      $region45: #{conv_block_forward.4} parent=39 // pred_check
        %p681 = pneg %p173
      $region46: #{conv_block_forward.4} parent=39 // pred_check_branch
        %683 = sbr.rel (%p681) target = $region48
      $region47: #{conv_block_forward.4} parent=39 // pred_region
        _
      $region48: #{conv_block_forward.4} parent=39 // pred_fallthru
        _
      // Predicated region
      $region49: #{conv_block_forward.4} parent=39 // pred_check
        %p684 = pneg %p199
      $region50: #{conv_block_forward.4} parent=39 // pred_check_branch
        %686 = sbr.rel (%p684) target = $region52
      $region51: #{conv_block_forward.4} parent=39 // pred_region
        _
      $region52: #{conv_block_forward.4} parent=39 // pred_fallthru
        _
    $region40: #{conv_block_forward.4} parent=5 // pred_fallthru
      _
    %p687 = scmp.le.s32.totalorder 2, %s14
    // Predicated region
    $region53: #{conv_block_forward.4} parent=5 // pred_check
      %p688 = pneg %p687
    $region54: #{conv_block_forward.4} parent=5 // pred_check_branch
      %690 = sbr.rel (%p688) target = $region56
    $region55: #{conv_block_forward.4} parent=5 // pred_region
      %s691 = ssub.s32 %s14, 2
      // Predicated region
      $region57: #{conv_block_forward.4} parent=55 // pred_check
        %p692 = pneg %p153
      $region58: #{conv_block_forward.4} parent=55 // pred_check_branch
        %694 = sbr.rel (%p692) target = $region60
      $region59: #{conv_block_forward.4} parent=55 // pred_region
        %p695 = scmp.lt.s32.totalorder %s20, 1
        %s696 = scalar_select %p695, %s20, 1
        %s697 = smul.addr %s696, 2
        %s698 = smul.addr %s697, 4
        %s699 = scalar_lea.vmem %s5, %s698
      $region60: #{conv_block_forward.4} parent=55 // pred_fallthru
        _
      // Predicated region
      $region61: #{conv_block_forward.4} parent=55 // pred_check
        %p700 = pneg %p179
      $region62: #{conv_block_forward.4} parent=55 // pred_check_branch
        %702 = sbr.rel (%p700) target = $region64
      $region63: #{conv_block_forward.4} parent=55 // pred_region
        %p703 = scmp.lt.s32.totalorder %s20, 1
        %s704 = scalar_select %p703, %s20, 1
        %s705 = smul.addr %s704, 4
        %s706 = scalar_lea.vmem %s6, %s705
      $region64: #{conv_block_forward.4} parent=55 // pred_fallthru
        _
      // Predicated region
      $region65: #{conv_block_forward.4} parent=55 // pred_check
        %p707 = pneg %p205
      $region66: #{conv_block_forward.4} parent=55 // pred_check_branch
        %709 = sbr.rel (%p707) target = $region68
      $region67: #{conv_block_forward.4} parent=55 // pred_region
        %p710 = scmp.lt.s32.totalorder %s20, 1
        %s711 = scalar_select %p710, %s20, 1
        %s712 = smul.addr %s711, 4
        %s713 = scalar_lea.vmem %s7, %s712
      $region68: #{conv_block_forward.4} parent=55 // pred_fallthru
        _
    $region56: #{conv_block_forward.4} parent=5 // pred_fallthru
      _
  $region6: #{conv_block_forward.4} parent=0 // loop_footer
    %s18 = sadd.s32 1, %s14
  $region7: #{conv_block_forward.4} parent=0 // loop_footer_branch
    %13 = sbr.rel target = $region3
  $region8: #{conv_block_forward.4} parent=0 // loop_exit
    _

</llo_original>
